<compile_context>
chip_gen: v7x
topology: tpu7x:2x2x1
jax: 0.10.0
libtpu: 0.0.40
codegen_flags: <defaults>
</compile_context>

<pallas_src>
import jax
import jax.numpy as jnp
from jax.experimental import pallas as pl
from jax.experimental.pallas import tpu as pltpu


def _round_up(x, m):
    return ((x + m - 1) // m) * m


def _make_kernel(tap_offsets, lane_tile):
    """Fused 3x3 conv + folded-BN affine + LeakyReLU(0.2) + residual add."""
    center_off = tap_offsets[4]          # (kh=1, kw=1) tap == the output pixel

    def kernel(w_ref, shift_ref, xm_ref, xh_ref, o_ref):
        # xm: (Cin, lane_tile) main spatial tile (f32, zero-padded input)
        # xh: (Cin, halo)      halo tile starting right after xm
        # Concatenated they form one contiguous window of the flattened padded
        # input, so every 3x3 tap is a static lane-offset slice of `xx`.
        xx = jnp.concatenate([xm_ref[...], xh_ref[...]], axis=-1)   # f32
        xx_bf = xx.astype(jnp.bfloat16)                             # MXU operand

        acc = jnp.zeros(o_ref.shape, jnp.float32)          # (Cout, lane_tile)
        for t, off in enumerate(tap_offsets):               # 9 shifted matmuls
            acc += jnp.dot(w_ref[t], xx_bf[:, off:off + lane_tile],
                           preferred_element_type=jnp.float32)

        # conv bias + eval-mode BatchNorm folded into a per-channel shift
        y = acc + shift_ref[...]
        # LeakyReLU(negative_slope=0.2)
        y = jnp.maximum(y, 0.2 * y)
        # residual add: x at the output pixel is the exact (f32) center tap
        o_ref[...] = (y + xx[:, center_off:center_off + lane_tile]
                      ).astype(o_ref.dtype)

    return kernel


def res_cba_forward(x_nchw, conv_w, conv_b, bn_gamma, bn_beta, bn_mean, bn_var,
                    eps=1e-5, lane_tile=2048):
    N, Cin, H, W = x_nchw.shape
    Cout, Cin_w, KH, KW = conv_w.shape
    assert Cin == Cin_w and Cout == Cin, "residual add requires Cout == Cin"
    assert KH == 3 and KW == 3, "padding=1 preserves spatial size only for k=3"

    f32 = jnp.float32
    bf16 = jnp.bfloat16
    Hp, Wp = H + 2, W + 2          # zero-padded spatial extents
    Lo = H * Wp                    # "wide" output length (2 junk cols per row)

    # ---- fold conv bias + eval-mode BN into weights / per-channel shift -----
    scale = (bn_gamma / jnp.sqrt(bn_var + eps)).astype(f32)                # (Cout,)
    shift = (bn_beta - scale * bn_mean + scale * conv_b).astype(f32)
    shift = shift.reshape(Cout, 1)
    w_eff = conv_w.astype(f32) * scale.reshape(Cout, 1, 1, 1)              # (Cout,Cin,3,3)
    w_taps = jnp.transpose(w_eff, (2, 3, 0, 1)).reshape(KH * KW, Cout, Cin)
    w_taps = w_taps.astype(bf16)

    # ---- tiling of the flattened (padded) spatial axis ----------------------
    t_halo = _round_up(2 * Wp + 2, 128)            # covers the max tap offset
    t_lane = max(t_halo, (lane_tile // t_halo) * t_halo)
    t_lane = min(t_lane, _round_up(Lo, t_halo))    # don't exceed one image
    n_tiles = -(-Lo // t_lane)
    lo_pad = n_tiles * t_lane
    l_in = lo_pad + t_halo
    ratio = t_lane // t_halo                       # halo blocks per main block

    # ---- padded input, spatial flattened, f32 (single input array) ----------
    x_pad = jnp.pad(x_nchw.astype(f32), ((0, 0), (0, 0), (1, 1), (1, 1)))
    x_flat = x_pad.reshape(N, Cin, Hp * Wp)
    x_flat = jnp.pad(x_flat, ((0, 0), (0, 0), (0, l_in - Hp * Wp)))

    tap_offsets = tuple(kh * Wp + kw for kh in range(KH) for kw in range(KW))
    kernel = _make_kernel(tap_offsets, t_lane)

    out = pl.pallas_call(
        kernel,
        out_shape=jax.ShapeDtypeStruct((N, Cout, lo_pad), f32),
        grid=(N, n_tiles),
        in_specs=[
            pl.BlockSpec((KH * KW, Cout, Cin), lambda n, j: (0, 0, 0)),   # weights
            pl.BlockSpec((Cout, 1), lambda n, j: (0, 0)),                 # BN shift
            pl.BlockSpec((None, Cin, t_lane), lambda n, j: (n, 0, j)),    # x (main)
            pl.BlockSpec((None, Cin, t_halo),                             # x (halo)
                         lambda n, j: (n, 0, (j + 1) * ratio)),
        ],
        out_specs=pl.BlockSpec((None, Cout, t_lane), lambda n, j: (n, 0, j)),
        compiler_params=pltpu.CompilerParams(
            dimension_semantics=("parallel", "parallel"),
            vmem_limit_bytes=32 * 1024 * 1024),
    )(w_taps, shift, x_flat, x_flat)

    # crop the wide/padded lanes back to (N, C, H, W)
    out = out[:, :, :Lo].reshape(N, Cout, H, Wp)[:, :, :, :W]
    return out


def res_cba_reference(x, conv_w, conv_b, gamma, beta, mean, var, eps=1e-5):
    """Pure-JAX reference matching the PyTorch eval-mode forward."""
    f32 = jnp.float32
    y = jax.lax.conv_general_dilated(
        x.astype(f32), conv_w.astype(f32),
        window_strides=(1, 1), padding=((1, 1), (1, 1)),
        dimension_numbers=("NCHW", "OIHW", "NCHW"))
    y = y + conv_b.reshape(1, -1, 1, 1)
    y = (gamma.reshape(1, -1, 1, 1) * (y - mean.reshape(1, -1, 1, 1))
         / jnp.sqrt(var.reshape(1, -1, 1, 1) + eps) + beta.reshape(1, -1, 1, 1))
    y = jnp.where(y >= 0.0, y, 0.2 * y)
    return y + x.astype(f32)


if __name__ == "__main__":
    key = jax.random.PRNGKey(0)
    k_x, k_w, k_b, k_g, k_bt, k_m, k_v = jax.random.split(key, 7)

    N, C, H, W, K = 2, 4, 16, 16, 3
    x = jax.random.normal(k_x, (N, C, H, W), dtype=jnp.float32)

    # deterministic synthetic parameters (shapes from res_CBA.__init__)
    conv_w = 0.1 * jax.random.normal(k_w, (C, C, K, K), dtype=jnp.float32)
    conv_b = 0.1 * jax.random.normal(k_b, (C,), dtype=jnp.float32)
    bn_gamma = 0.5 + jax.random.uniform(k_g, (C,), dtype=jnp.float32)
    bn_beta = 0.1 * jax.random.normal(k_bt, (C,), dtype=jnp.float32)
    bn_mean = 0.1 * jax.random.normal(k_m, (C,), dtype=jnp.float32)
    bn_var = 0.5 + jax.random.uniform(k_v, (C,), dtype=jnp.float32)

    ref = res_cba_reference(x, conv_w, conv_b, bn_gamma, bn_beta, bn_mean,
                            bn_var)

    # default (large) spatial tile
    out = res_cba_forward(x, conv_w, conv_b, bn_gamma, bn_beta, bn_mean, bn_var)
    out = jax.block_until_ready(out)
    assert out.shape == (N, C, H, W)
    # bf16 matmul operands (f32 accumulation) -> relaxed tolerance
    assert jnp.allclose(out, ref, atol=3e-2, rtol=3e-2), "mismatch (default tile)"

    # small tile: exercises the multi-tile grid + halo BlockSpec path
    out_t = res_cba_forward(x, conv_w, conv_b, bn_gamma, bn_beta, bn_mean,
                            bn_var, lane_tile=128)
    out_t = jax.block_until_ready(out_t)
    assert jnp.allclose(out_t, ref, atol=3e-2, rtol=3e-2), "mismatch (tiled)"

    print("KERNEL_OK")
</pallas_src>

<mosaic_0001>
module attributes {stable_mosaic.version = 11 : i64} {
  func.func @kernel(%arg0: i32, %arg1: i32, %arg2: memref<9x4x4xbf16, #tpu.memory_space<vmem>>, %arg3: memref<4x1xf32, #tpu.memory_space<vmem>>, %arg4: memref<1x4x384xf32, #tpu.memory_space<vmem>>, %arg5: memref<1x4x128xf32, #tpu.memory_space<vmem>>, %arg6: memref<1x4x384xf32, #tpu.memory_space<vmem>>) attributes {dimension_semantics = [#tpu.dimension_semantics<parallel>, #tpu.dimension_semantics<parallel>], iteration_bounds = array<i64: 2, 1>, scalar_prefetch = 0 : i64, scratch_operands = 0 : i64, tpu.core_type = #tpu.core_type<tc>, window_params = [{pipeline_mode = #tpu.pipeline_mode<synchronous>, transform_indices = @transform_0, window_bounds = array<i64: 9, 4, 4>}, {pipeline_mode = #tpu.pipeline_mode<synchronous>, transform_indices = @transform_1, window_bounds = array<i64: 4, 1>}, {transform_indices = @transform_2, window_bounds = array<i64: 1, 4, 384>}, {transform_indices = @transform_3, window_bounds = array<i64: 1, 4, 128>}, {transform_indices = @transform_4, window_bounds = array<i64: 1, 4, 384>}]} {
    %c0 = arith.constant 0 : index
    %c0_0 = arith.constant 0 : index
    %c0_1 = arith.constant 0 : index
    %0 = vector.load %arg4[%c0, %c0_0, %c0_1] : memref<1x4x384xf32, #tpu.memory_space<vmem>>, vector<1x4x384xf32>
    %1 = vector.shape_cast %0 : vector<1x4x384xf32> to vector<4x384xf32>
    %c0_2 = arith.constant 0 : index
    %c0_3 = arith.constant 0 : index
    %c0_4 = arith.constant 0 : index
    %2 = vector.load %arg5[%c0_2, %c0_3, %c0_4] : memref<1x4x128xf32, #tpu.memory_space<vmem>>, vector<1x4x128xf32>
    %3 = vector.shape_cast %2 : vector<1x4x128xf32> to vector<4x128xf32>
    %4 = tpu.concatenate %1, %3 in 1 : vector<4x384xf32>, vector<4x128xf32> -> vector<4x512xf32>
    %5 = arith.truncf %4 : vector<4x512xf32> to vector<4x512xbf16>
    %cst = arith.constant 0.000000e+00 : f32
    %6 = vector.broadcast %cst : f32 to vector<4x384xf32>
    %c0_5 = arith.constant 0 : index
    %c0_6 = arith.constant 0 : index
    %c0_7 = arith.constant 0 : index
    %7 = vector.load %arg2[%c0_5, %c0_6, %c0_7] : memref<9x4x4xbf16, #tpu.memory_space<vmem>>, vector<1x4x4xbf16>
    %8 = vector.shape_cast %7 : vector<1x4x4xbf16> to vector<4x4xbf16>
    %9 = vector.extract_strided_slice %5 {offsets = [0, 0], sizes = [4, 384], strides = [1, 1]} : vector<4x512xbf16> to vector<4x384xbf16>
    %cst_8 = arith.constant dense<0.000000e+00> : vector<4x384xf32>
    %10 = tpu.matmul %8, %9, %cst_8 {dimension_numbers = #tpu.dot_dimension_numbers<[1], [0], [0], [1], [0, 0, 1, 1], [], []>} : vector<4x4xbf16>, vector<4x384xbf16>, vector<4x384xf32> -> vector<4x384xf32>
    %11 = arith.addf %6, %10 : vector<4x384xf32>
    %c1 = arith.constant 1 : index
    %c0_9 = arith.constant 0 : index
    %c0_10 = arith.constant 0 : index
    %12 = vector.load %arg2[%c1, %c0_9, %c0_10] : memref<9x4x4xbf16, #tpu.memory_space<vmem>>, vector<1x4x4xbf16>
    %13 = vector.shape_cast %12 : vector<1x4x4xbf16> to vector<4x4xbf16>
    %14 = vector.extract_strided_slice %5 {offsets = [0, 1], sizes = [4, 384], strides = [1, 1]} : vector<4x512xbf16> to vector<4x384xbf16>
    %cst_11 = arith.constant dense<0.000000e+00> : vector<4x384xf32>
    %15 = tpu.matmul %13, %14, %cst_11 {dimension_numbers = #tpu.dot_dimension_numbers<[1], [0], [0], [1], [0, 0, 1, 1], [], []>} : vector<4x4xbf16>, vector<4x384xbf16>, vector<4x384xf32> -> vector<4x384xf32>
    %16 = arith.addf %11, %15 : vector<4x384xf32>
    %c2 = arith.constant 2 : index
    %c0_12 = arith.constant 0 : index
    %c0_13 = arith.constant 0 : index
    %17 = vector.load %arg2[%c2, %c0_12, %c0_13] : memref<9x4x4xbf16, #tpu.memory_space<vmem>>, vector<1x4x4xbf16>
    %18 = vector.shape_cast %17 : vector<1x4x4xbf16> to vector<4x4xbf16>
    %19 = vector.extract_strided_slice %5 {offsets = [0, 2], sizes = [4, 384], strides = [1, 1]} : vector<4x512xbf16> to vector<4x384xbf16>
    %cst_14 = arith.constant dense<0.000000e+00> : vector<4x384xf32>
    %20 = tpu.matmul %18, %19, %cst_14 {dimension_numbers = #tpu.dot_dimension_numbers<[1], [0], [0], [1], [0, 0, 1, 1], [], []>} : vector<4x4xbf16>, vector<4x384xbf16>, vector<4x384xf32> -> vector<4x384xf32>
    %21 = arith.addf %16, %20 : vector<4x384xf32>
    %c3 = arith.constant 3 : index
    %c0_15 = arith.constant 0 : index
    %c0_16 = arith.constant 0 : index
    %22 = vector.load %arg2[%c3, %c0_15, %c0_16] : memref<9x4x4xbf16, #tpu.memory_space<vmem>>, vector<1x4x4xbf16>
    %23 = vector.shape_cast %22 : vector<1x4x4xbf16> to vector<4x4xbf16>
    %24 = vector.extract_strided_slice %5 {offsets = [0, 18], sizes = [4, 384], strides = [1, 1]} : vector<4x512xbf16> to vector<4x384xbf16>
    %cst_17 = arith.constant dense<0.000000e+00> : vector<4x384xf32>
    %25 = tpu.matmul %23, %24, %cst_17 {dimension_numbers = #tpu.dot_dimension_numbers<[1], [0], [0], [1], [0, 0, 1, 1], [], []>} : vector<4x4xbf16>, vector<4x384xbf16>, vector<4x384xf32> -> vector<4x384xf32>
    %26 = arith.addf %21, %25 : vector<4x384xf32>
    %c4 = arith.constant 4 : index
    %c0_18 = arith.constant 0 : index
    %c0_19 = arith.constant 0 : index
    %27 = vector.load %arg2[%c4, %c0_18, %c0_19] : memref<9x4x4xbf16, #tpu.memory_space<vmem>>, vector<1x4x4xbf16>
    %28 = vector.shape_cast %27 : vector<1x4x4xbf16> to vector<4x4xbf16>
    %29 = vector.extract_strided_slice %5 {offsets = [0, 19], sizes = [4, 384], strides = [1, 1]} : vector<4x512xbf16> to vector<4x384xbf16>
    %cst_20 = arith.constant dense<0.000000e+00> : vector<4x384xf32>
    %30 = tpu.matmul %28, %29, %cst_20 {dimension_numbers = #tpu.dot_dimension_numbers<[1], [0], [0], [1], [0, 0, 1, 1], [], []>} : vector<4x4xbf16>, vector<4x384xbf16>, vector<4x384xf32> -> vector<4x384xf32>
    %31 = arith.addf %26, %30 : vector<4x384xf32>
    %c5 = arith.constant 5 : index
    %c0_21 = arith.constant 0 : index
    %c0_22 = arith.constant 0 : index
    %32 = vector.load %arg2[%c5, %c0_21, %c0_22] : memref<9x4x4xbf16, #tpu.memory_space<vmem>>, vector<1x4x4xbf16>
    %33 = vector.shape_cast %32 : vector<1x4x4xbf16> to vector<4x4xbf16>
    %34 = vector.extract_strided_slice %5 {offsets = [0, 20], sizes = [4, 384], strides = [1, 1]} : vector<4x512xbf16> to vector<4x384xbf16>
    %cst_23 = arith.constant dense<0.000000e+00> : vector<4x384xf32>
    %35 = tpu.matmul %33, %34, %cst_23 {dimension_numbers = #tpu.dot_dimension_numbers<[1], [0], [0], [1], [0, 0, 1, 1], [], []>} : vector<4x4xbf16>, vector<4x384xbf16>, vector<4x384xf32> -> vector<4x384xf32>
    %36 = arith.addf %31, %35 : vector<4x384xf32>
    %c6 = arith.constant 6 : index
    %c0_24 = arith.constant 0 : index
    %c0_25 = arith.constant 0 : index
    %37 = vector.load %arg2[%c6, %c0_24, %c0_25] : memref<9x4x4xbf16, #tpu.memory_space<vmem>>, vector<1x4x4xbf16>
    %38 = vector.shape_cast %37 : vector<1x4x4xbf16> to vector<4x4xbf16>
    %39 = vector.extract_strided_slice %5 {offsets = [0, 36], sizes = [4, 384], strides = [1, 1]} : vector<4x512xbf16> to vector<4x384xbf16>
    %cst_26 = arith.constant dense<0.000000e+00> : vector<4x384xf32>
    %40 = tpu.matmul %38, %39, %cst_26 {dimension_numbers = #tpu.dot_dimension_numbers<[1], [0], [0], [1], [0, 0, 1, 1], [], []>} : vector<4x4xbf16>, vector<4x384xbf16>, vector<4x384xf32> -> vector<4x384xf32>
    %41 = arith.addf %36, %40 : vector<4x384xf32>
    %c7 = arith.constant 7 : index
    %c0_27 = arith.constant 0 : index
    %c0_28 = arith.constant 0 : index
    %42 = vector.load %arg2[%c7, %c0_27, %c0_28] : memref<9x4x4xbf16, #tpu.memory_space<vmem>>, vector<1x4x4xbf16>
    %43 = vector.shape_cast %42 : vector<1x4x4xbf16> to vector<4x4xbf16>
    %44 = vector.extract_strided_slice %5 {offsets = [0, 37], sizes = [4, 384], strides = [1, 1]} : vector<4x512xbf16> to vector<4x384xbf16>
    %cst_29 = arith.constant dense<0.000000e+00> : vector<4x384xf32>
    %45 = tpu.matmul %43, %44, %cst_29 {dimension_numbers = #tpu.dot_dimension_numbers<[1], [0], [0], [1], [0, 0, 1, 1], [], []>} : vector<4x4xbf16>, vector<4x384xbf16>, vector<4x384xf32> -> vector<4x384xf32>
    %46 = arith.addf %41, %45 : vector<4x384xf32>
    %c8 = arith.constant 8 : index
    %c0_30 = arith.constant 0 : index
    %c0_31 = arith.constant 0 : index
    %47 = vector.load %arg2[%c8, %c0_30, %c0_31] : memref<9x4x4xbf16, #tpu.memory_space<vmem>>, vector<1x4x4xbf16>
    %48 = vector.shape_cast %47 : vector<1x4x4xbf16> to vector<4x4xbf16>
    %49 = vector.extract_strided_slice %5 {offsets = [0, 38], sizes = [4, 384], strides = [1, 1]} : vector<4x512xbf16> to vector<4x384xbf16>
    %cst_32 = arith.constant dense<0.000000e+00> : vector<4x384xf32>
    %50 = tpu.matmul %48, %49, %cst_32 {dimension_numbers = #tpu.dot_dimension_numbers<[1], [0], [0], [1], [0, 0, 1, 1], [], []>} : vector<4x4xbf16>, vector<4x384xbf16>, vector<4x384xf32> -> vector<4x384xf32>
    %51 = arith.addf %46, %50 : vector<4x384xf32>
    %c0_33 = arith.constant 0 : index
    %c0_34 = arith.constant 0 : index
    %52 = vector.load %arg3[%c0_33, %c0_34] : memref<4x1xf32, #tpu.memory_space<vmem>>, vector<4x1xf32>
    %53 = vector.broadcast %52 : vector<4x1xf32> to vector<4x384xf32>
    %54 = arith.addf %51, %53 : vector<4x384xf32>
    %cst_35 = arith.constant 2.000000e-01 : f32
    %55 = vector.broadcast %cst_35 : f32 to vector<4x384xf32>
    %56 = arith.mulf %55, %54 : vector<4x384xf32>
    %57 = arith.maximumf %54, %56 : vector<4x384xf32>
    %58 = vector.extract_strided_slice %4 {offsets = [0, 19], sizes = [4, 384], strides = [1, 1]} : vector<4x512xf32> to vector<4x384xf32>
    %59 = arith.addf %57, %58 : vector<4x384xf32>
    %c0_36 = arith.constant 0 : index
    %c0_37 = arith.constant 0 : index
    %c0_38 = arith.constant 0 : index
    %60 = vector.load %arg6[%c0_36, %c0_37, %c0_38] : memref<1x4x384xf32, #tpu.memory_space<vmem>>, vector<1x4x384xf32>
    %61 = vector.shape_cast %60 : vector<1x4x384xf32> to vector<4x384xf32>
    %62 = vector.shape_cast %59 : vector<4x384xf32> to vector<1x4x384xf32>
    tpu.vector_store %arg6[%c0_36, %c0_37, %c0_38], %62 {strides = array<i32>} : memref<1x4x384xf32, #tpu.memory_space<vmem>>, vector<1x4x384xf32>,
    return
  }
  func.func @transform_0(%arg0: i32, %arg1: i32) -> (i32, i32, i32) {
    %c0_i32 = arith.constant 0 : i32
    %c0_i32_0 = arith.constant 0 : i32
    %c0_i32_1 = arith.constant 0 : i32
    %c0_i32_2 = arith.constant 0 : i32
    return %c0_i32, %c0_i32_0, %c0_i32_1 : i32, i32, i32
  }
  func.func @transform_1(%arg0: i32, %arg1: i32) -> (i32, i32) {
    %c0_i32 = arith.constant 0 : i32
    %c0_i32_0 = arith.constant 0 : i32
    %c0_i32_1 = arith.constant 0 : i32
    return %c0_i32, %c0_i32_0 : i32, i32
  }
  func.func @transform_2(%arg0: i32, %arg1: i32) -> (i32, i32, i32) {
    %c0_i32 = arith.constant 0 : i32
    %c0_i32_0 = arith.constant 0 : i32
    return %arg0, %c0_i32, %arg1 : i32, i32, i32
  }
  func.func @transform_3(%arg0: i32, %arg1: i32) -> (i32, i32, i32) {
    %c1_i32 = arith.constant 1 : i32
    %0 = arith.addi %arg1, %c1_i32 : i32
    %c3_i32 = arith.constant 3 : i32
    %1 = arith.muli %0, %c3_i32 : i32
    %c0_i32 = arith.constant 0 : i32
    %c0_i32_0 = arith.constant 0 : i32
    return %arg0, %c0_i32, %1 : i32, i32, i32
  }
  func.func @transform_4(%arg0: i32, %arg1: i32) -> (i32, i32, i32) {
    %c0_i32 = arith.constant 0 : i32
    %c0_i32_0 = arith.constant 0 : i32
    return %arg0, %c0_i32, %arg1 : i32, i32, i32
  }
}

</mosaic_0001>

<llo_original>
// kernel: tpu_custom_call.1
$region0: #{tpu_custom_call.1}
  #allocation0 [shape = 'u32[]', space=smem, size = 0x4, offset = 0x4, fixed_abs, tag = 'smem constant byte address 0x4 - core index']
  #allocation1 [shape = 'u32[144,128]{1,0:T(1,128)}', space=vmem, size = 0x12000, scoped, tag = 'internal scratch']
  %s0 = inlined_call_operand.vmem [shape: bf16[9,4,4], index: 0, kind: input, shape index: {}]
  %s1 = inlined_call_operand.vmem [shape: f32[4,1], index: 1, kind: input, shape index: {}]
  %s2 = inlined_call_operand.vmem [shape: f32[2,4,512], index: 2, kind: input, shape index: {}]
  %s3 = inlined_call_operand.hbm [shape: f32[2,4,512], index: 3, kind: input, shape index: {}]
  %s4 = inlined_call_operand.hbm [shape: f32[2,4,384], index: 4, kind: output, shape index: {}]
  %s5 = sld [smem:[#allocation0]]
  $region53: #{tpu_custom_call.1} parent=0
    _
  %s7 = ssub.s32 1, %s5
  %s8 = scalar_select 0, %s7, %s5
  $region1: #{tpu_custom_call.1} parent=0
    #allocation2 [shape = 'u8[4096]{0}', space=vmem, size = 0x1000, scoped, tag = 'input window, operand 3']
    #allocation3 [shape = 's32[2]{0}', space=sflag, size = 0x8, scoped, tag = 'scoped memory for tpu_custom_call.1']
    #allocation4 [shape = 's32[2]{0}', space=sflag, size = 0x8, scoped, tag = 'scoped memory for tpu_custom_call.1']
    #allocation5 [shape = 'u8[12288]{0}', space=vmem, size = 0x3000, scoped, tag = 'output window, operand 0']
    %9 = vsyncpa [#allocation3], 0
    %s10 = scalar_lea.sflag [#allocation3], 1
    %11 = vsyncpa %s10, 0
    %12 = vsyncpa [#allocation4], 0
    %s13 = scalar_lea.sflag [#allocation4], 1
    %14 = vsyncpa %s13, 0
    loop: start=0, step=1, limit=4
    $region2: #{tpu_custom_call.1} parent=1 // loop_pre_header
      _
    $region3: #{tpu_custom_call.1} parent=1 // loop_header
      %s16 = sphi 0, %s20
      %p17 = scmp.ge.s32.totalorder %s16, 4
      %s23 = sphi 0, %s35
      %s24 = sphi 0, %s31
      %s25 = sphi 0, %s23
      %s26 = sphi 0, %s24
      %s27 = sphi 0, %s25
      %s28 = sphi 0, %s26
      %s36 = sphi 0, %s36
      %s38 = sphi 0, %s36
      %s39 = sphi 0, %s38
      %s53 = sphi 0, %s39
      %s57 = sphi 0, %s57
      %s59 = sphi 0, %s57
      %s60 = sphi 0, %s59
      %s74 = sphi 0, %s60
      %s82 = sphi 0, %s84
      %s85 = sphi 0, %s82
      %s86 = sphi 0, %s85
      %s102 = sphi 0, %s86
      %s114 = sphi 0, %s116
      %s117 = sphi 0, %s114
      %s118 = sphi 0, %s117
      %s134 = sphi 0, %s118
      %s142 = sphi 0, %s144
      %s145 = sphi 0, %s142
      %s146 = sphi 0, %s145
      %s162 = sphi 0, %s146
    $region4: #{tpu_custom_call.1} parent=1 // loop_header_branch
      %19 = sbr.rel (%p17) target = $region8
    $region5: #{tpu_custom_call.1} parent=1 // loop_body
      %s21 = ssub.s32 %s16, 1
      %s22 = ssub.s32 %s16, 2
      %s29 = sadd.s32 1, %s24
      %p30 = scmp.ge.s32.totalorder %s29, 1
      %s31 = scalar_select %p30, 0, %s29
      %s32 = sadd.s32 1, %s23
      %s33 = scalar_select %p30, %s32, %s23
      %p34 = scmp.ge.s32.totalorder %s33, 2
      %s35 = scalar_select %p34, 0, %s33
      %s37 = sadd.s32 %s36, 1
      %p40 = scmp.eq.s32.totalorder %s16, 1
      %p41 = scmp.ne.s32.totalorder %s36, %s38
      %p42 = scmp.eq.s32.totalorder %s16, 0
      %p43 = por %p41, %p42
      %p44 = scmp.ne.s32.totalorder %s36, %s38
      %p45 = scmp.eq.s32.totalorder %s21, 1
      %p46 = por %p44, %p45
      %p47 = scmp.ne.s32.totalorder %s38, %s39
      %p48 = scmp.eq.s32.totalorder %s21, 0
      %p49 = por %p47, %p48
      %p50 = scmp.ne.s32.totalorder %s38, %s39
      %p51 = scmp.eq.s32.totalorder %s22, 1
      %p52 = por %p50, %p51
      %p54 = scmp.ne.s32.totalorder %s39, %s53
      %p55 = scmp.eq.s32.totalorder %s22, 0
      %p56 = por %p54, %p55
      %s58 = sadd.s32 %s57, 1
      %p61 = scmp.eq.s32.totalorder %s16, 1
      %p62 = scmp.ne.s32.totalorder %s57, %s59
      %p63 = scmp.eq.s32.totalorder %s16, 0
      %p64 = por %p62, %p63
      %p65 = scmp.ne.s32.totalorder %s57, %s59
      %p66 = scmp.eq.s32.totalorder %s21, 1
      %p67 = por %p65, %p66
      %p68 = scmp.ne.s32.totalorder %s59, %s60
      %p69 = scmp.eq.s32.totalorder %s21, 0
      %p70 = por %p68, %p69
      %p71 = scmp.ne.s32.totalorder %s59, %s60
      %p72 = scmp.eq.s32.totalorder %s22, 1
      %p73 = por %p71, %p72
      %p75 = scmp.ne.s32.totalorder %s60, %s74
      %p76 = scmp.eq.s32.totalorder %s22, 0
      %p77 = por %p75, %p76
      %s78 = ssub.s32 %s23, %s35
      %s79 = ssub.s32 %s24, %s31
      %s80 = sor.u32 %s78, %s79
      %p81 = scmp.eq.s32.totalorder %s80, 0
      %s83 = sadd.s32 %s82, 1
      %s84 = scalar_select %p81, %s82, %s83
      %p87 = pneg %p81
      %p88 = scmp.eq.s32.totalorder %s16, 1
      %p89 = por %p87, %p88
      %p90 = scmp.ne.s32.totalorder %s82, %s85
      %p91 = scmp.eq.s32.totalorder %s16, 0
      %p92 = por %p90, %p91
      %p93 = scmp.ne.s32.totalorder %s82, %s85
      %p94 = scmp.eq.s32.totalorder %s21, 1
      %p95 = por %p93, %p94
      %p96 = scmp.ne.s32.totalorder %s85, %s86
      %p97 = scmp.eq.s32.totalorder %s21, 0
      %p98 = por %p96, %p97
      %p99 = scmp.ne.s32.totalorder %s85, %s86
      %p100 = scmp.eq.s32.totalorder %s22, 1
      %p101 = por %p99, %p100
      %p103 = scmp.ne.s32.totalorder %s86, %s102
      %p104 = scmp.eq.s32.totalorder %s22, 0
      %p105 = por %p103, %p104
      %s106 = sadd.s32 %s24, 1
      %s107 = smul.u32 %s106, 3
      %s108 = sadd.s32 %s31, 1
      %s109 = smul.u32 %s108, 3
      %s110 = ssub.s32 %s23, %s35
      %s111 = ssub.s32 %s107, %s109
      %s112 = sor.u32 %s110, %s111
      %p113 = scmp.eq.s32.totalorder %s112, 0
      %s115 = sadd.s32 %s114, 1
      %s116 = scalar_select %p113, %s114, %s115
      %p119 = pneg %p113
      %p120 = scmp.eq.s32.totalorder %s16, 1
      %p121 = por %p119, %p120
      %p122 = scmp.ne.s32.totalorder %s114, %s117
      %p123 = scmp.eq.s32.totalorder %s16, 0
      %p124 = por %p122, %p123
      %p125 = scmp.ne.s32.totalorder %s114, %s117
      %p126 = scmp.eq.s32.totalorder %s21, 1
      %p127 = por %p125, %p126
      %p128 = scmp.ne.s32.totalorder %s117, %s118
      %p129 = scmp.eq.s32.totalorder %s21, 0
      %p130 = por %p128, %p129
      %p131 = scmp.ne.s32.totalorder %s117, %s118
      %p132 = scmp.eq.s32.totalorder %s22, 1
      %p133 = por %p131, %p132
      %p135 = scmp.ne.s32.totalorder %s118, %s134
      %p136 = scmp.eq.s32.totalorder %s22, 0
      %p137 = por %p135, %p136
      %s138 = ssub.s32 %s23, %s35
      %s139 = ssub.s32 %s24, %s31
      %s140 = sor.u32 %s138, %s139
      %p141 = scmp.eq.s32.totalorder %s140, 0
      %s143 = sadd.s32 %s142, 1
      %s144 = scalar_select %p141, %s142, %s143
      %p147 = pneg %p141
      %p148 = scmp.eq.s32.totalorder %s16, 1
      %p149 = por %p147, %p148
      %p150 = scmp.ne.s32.totalorder %s142, %s145
      %p151 = scmp.eq.s32.totalorder %s16, 0
      %p152 = por %p150, %p151
      %p153 = scmp.ne.s32.totalorder %s142, %s145
      %p154 = scmp.eq.s32.totalorder %s21, 1
      %p155 = por %p153, %p154
      %p156 = scmp.ne.s32.totalorder %s145, %s146
      %p157 = scmp.eq.s32.totalorder %s21, 0
      %p158 = por %p156, %p157
      %p159 = scmp.ne.s32.totalorder %s145, %s146
      %p160 = scmp.eq.s32.totalorder %s22, 1
      %p161 = por %p159, %p160
      %p163 = scmp.ne.s32.totalorder %s146, %s162
      %p164 = scmp.eq.s32.totalorder %s22, 0
      %p165 = por %p163, %p164
      %p166 = scmp.le.s32.totalorder 1, %s16
      %p167 = scmp.lt.s32.totalorder %s16, 3
      %p168 = pnand %p166, %p167
      %p169 = pneg %p168
      // Predicated region
      $region9: #{tpu_custom_call.1} parent=5 // pred_check
        _
      $region10: #{tpu_custom_call.1} parent=5 // pred_check_branch
        %171 = sbr.rel (%p168) target = $region12
      $region11: #{tpu_custom_call.1} parent=5 // pred_region
        %s172 = ssub.s32 %s16, 1
        // Predicated region
        $region13: #{tpu_custom_call.1} parent=11 // pred_check
          %p173 = pneg %p49
        $region14: #{tpu_custom_call.1} parent=11 // pred_check_branch
          %175 = sbr.rel (%p173) target = $region16
        $region15: #{tpu_custom_call.1} parent=11 // pred_region
          _
        $region16: #{tpu_custom_call.1} parent=11 // pred_fallthru
          _
        // Predicated region
        $region17: #{tpu_custom_call.1} parent=11 // pred_check
          %p176 = pneg %p70
        $region18: #{tpu_custom_call.1} parent=11 // pred_check_branch
          %178 = sbr.rel (%p176) target = $region20
        $region19: #{tpu_custom_call.1} parent=11 // pred_region
          _
        $region20: #{tpu_custom_call.1} parent=11 // pred_fallthru
          _
      $region12: #{tpu_custom_call.1} parent=5 // pred_fallthru
        _
      %p179 = scmp.lt.s32.totalorder %s16, 2
      // Predicated region
      $region21: #{tpu_custom_call.1} parent=5 // pred_check
        %p180 = pneg %p179
      $region22: #{tpu_custom_call.1} parent=5 // pred_check_branch
        %182 = sbr.rel (%p180) target = $region24
      $region23: #{tpu_custom_call.1} parent=5 // pred_region
        // Predicated region
        $region25: #{tpu_custom_call.1} parent=23 // pred_check
          %p183 = pneg %p92
        $region26: #{tpu_custom_call.1} parent=23 // pred_check_branch
          %185 = sbr.rel (%p183) target = $region28
        $region27: #{tpu_custom_call.1} parent=23 // pred_region
          %s186 = smul.u32 3, %s24
          %s187 = ssub.s32 4, %s186
          %p188 = scmp.lt.s32.totalorder %s187, 3
          %s189 = scalar_select %p188, %s187, 3
          %s190 = smul.u32 64, %s189
          %p191 = scmp.lt.s32.totalorder %s23, 1
          %s192 = scalar_select %p191, %s23, 1
          %p193 = scmp.lt.s32.totalorder %s186, 3
          %s194 = scalar_select %p193, %s186, 3
          %s195 = smul.addr %s192, 4
          %s196 = sadd.s32 %s194, %s195
          %s197 = smul.addr %s196, 4
          %s198 = scalar_lea.vmem %s2, %s197
          %s199 = smul.u32 3, %s24
          %s200 = ssub.s32 4, %s199
          %p201 = scmp.lt.s32.totalorder %s200, 3
          %s202 = scalar_select %p201, %s200, 3
          %s203 = smul.u32 64, %s202
        $region28: #{tpu_custom_call.1} parent=23 // pred_fallthru
          _
        // Predicated region
        $region29: #{tpu_custom_call.1} parent=23 // pred_check
          %p204 = pneg %p124
        $region30: #{tpu_custom_call.1} parent=23 // pred_check_branch
          %206 = sbr.rel (%p204) target = $region32
        $region31: #{tpu_custom_call.1} parent=23 // pred_region
          %s207 = sand.u32 %s114, 1
          %s208 = scalar_lea.sflag [#allocation3], %s207
          %s209 = sand.u32 %s114, 1
          %s210 = smul.addr %s209, 4
          %s211 = scalar_lea.vmem [#allocation2], %s210
          %s212 = sadd.s32 %s24, 1
          %s213 = smul.u32 %s212, 3
          %s215 = ssub.s32 64, 64
          %216 = vsyncadd %s208, %s215
          %s217 = smul.addr %s23, 4
          %s218 = sadd.s32 %s213, %s217
          %s219 = smul.addr %s218, 64
          %s220 = scalar_lea.hbm %s3, %s219
          %s222 = sshll.u32 %s211, 4
          %s223 = int_to_ptr.vmem [resolvable:$true] %s222
          %225 = dma.hbm_to_vmem [thread:$0]  %s220, 64, %s223, %s208
        $region32: #{tpu_custom_call.1} parent=23 // pred_fallthru
          _
      $region24: #{tpu_custom_call.1} parent=5 // pred_fallthru
        _
      %p226 = scmp.le.s32.totalorder 1, %s16
      %p227 = scmp.lt.s32.totalorder %s16, 3
      %p228 = pnand %p226, %p227
      %p229 = pneg %p228
      // Predicated region
      $region33: #{tpu_custom_call.1} parent=5 // pred_check
        _
      $region34: #{tpu_custom_call.1} parent=5 // pred_check_branch
        %231 = sbr.rel (%p228) target = $region36
      $region35: #{tpu_custom_call.1} parent=5 // pred_region
        %s232 = ssub.s32 %s16, 1
        %s233 = sand.u32 %s117, 1
        %s234 = scalar_lea.sflag [#allocation3], %s233
        %s235 = sand.u32 %s117, 1
        %s236 = smul.addr %s235, 4
        %s237 = scalar_lea.vmem [#allocation2], %s236
        // Predicated region
        $region37: #{tpu_custom_call.1} parent=35 // pred_check
          %p238 = pneg %p130
        $region38: #{tpu_custom_call.1} parent=35 // pred_check_branch
          %240 = sbr.rel (%p238) target = $region40
        $region39: #{tpu_custom_call.1} parent=35 // pred_region
          %241 = dma.done %s234, 64
        $region40: #{tpu_custom_call.1} parent=35 // pred_fallthru
          _
        %p242 = pneg %p49
        %p243 = pneg %p46
        %p244 = pneg %p70
        %p245 = pneg %p67
        %s246 = smul.u32 3, %s26
        %s247 = ssub.s32 4, %s246
        %p248 = scmp.lt.s32.totalorder %s247, 3
        %s249 = scalar_select %p248, %s247, 3
        %s250 = smul.u32 64, %s249
        %p251 = scmp.lt.s32.totalorder %s25, 1
        %s252 = scalar_select %p251, %s25, 1
        %p253 = scmp.lt.s32.totalorder %s246, 3
        %s254 = scalar_select %p253, %s246, 3
        %s255 = smul.addr %s252, 4
        %s256 = sadd.s32 %s254, %s255
        %s257 = smul.addr %s256, 4
        %s258 = scalar_lea.vmem %s2, %s257
        %p259 = pneg %p98
        %p260 = pneg %p95
        %s261 = sand.u32 %s117, 1
        %s262 = scalar_lea.sflag [#allocation3], %s261
        %s263 = sand.u32 %s117, 1
        %s264 = smul.addr %s263, 4
        %s265 = scalar_lea.vmem [#allocation2], %s264
        %p266 = pneg %p130
        %p267 = pneg %p127
        %p268 = pneg %p158
        %p269 = pneg %p155
        %s270 = sand.u32 %s145, 1
        %s271 = scalar_lea.sflag [#allocation4], %s270
        %s272 = sand.u32 %s145, 1
        %s273 = smul.addr %s272, 12
        %s274 = scalar_lea.vmem [#allocation5], %s273
        %s275 = smul.u32 3, %s26
        %s276 = ssub.s32 4, %s275
        %p277 = scmp.lt.s32.totalorder %s276, 3
        %s278 = scalar_select %p277, %s276, 3
        %s279 = smul.u32 64, %s278
        %p280 = scmp.lt.s32.totalorder %s25, 1
        %s281 = scalar_select %p280, %s25, 1
        %p282 = scmp.lt.s32.totalorder %s275, 3
        %s283 = scalar_select %p282, %s275, 3
        %s284 = smul.addr %s281, 4
        %s285 = sadd.s32 %s283, %s284
        %s286 = smul.addr %s285, 4
        %s287 = scalar_lea.vmem %s2, %s286
        %s288 = smul.u32 3, %s26
        %s289 = ssub.s32 4, %s288
        %p290 = scmp.lt.s32.totalorder %s289, 3
        %s291 = scalar_select %p290, %s289, 3
        %s292 = smul.u32 64, %s291
        %s293 = sadd.s32 %s26, 1
        %s294 = smul.u32 %s293, 3
        %s295 = smul.u32 3, %s26
        %v297 = vld [vmem:[%s287] sm:$0xff]
        %v298 = vld [vmem:[%s287 + $0x8] sm:$0xf]
        %v299 = vld [vmem:[%s237] sm:$0xf]
        %v302 = vcombine.high %v297, %v297
        %v304 = vpack.c.bf16 %v297, %v297
        %v305 = vpack.c.bf16 %v302, %v302
        %v306 = vpack.c.bf16 %v298, %v298
        %v307 = vpack.c.bf16 %v299, %v299
        %v308 = vld [vmem:[%s0] sm:$0x3]
        %s309 = scalar_lea.vmem %s0, 2
        %v310 = vld [vmem:[%s309] sm:$0x3]
        %315 = vrot.lane.b32.xlu0 %v304, 127
        %v316 = vpop.permute.xlu0 %315
        %317 = vrot.lane.b32.xlu0 %v305, 127
        %v318 = vpop.permute.xlu0 %317
        %319 = vrot.lane.b32.xlu0 %v306, 127
        %v320 = vpop.permute.xlu0 %319
        %321 = vrot.lane.b32.xlu0 %v307, 127
        %v322 = vpop.permute.xlu0 %321
        %vm323 = vcmask 1039360
        %v324 = vsel %vm323, %v316, %v318
        %v325 = vsel %vm323, %v318, %v320
        %v326 = vsel %vm323, %v320, %v322
        %vm327 = vcmask 31744
        %v329 = vsel %vm327, %v310, 0
        %vm331 = vcmask 1041408
        %v333 = vsel %vm331, %v324, 0
        %v336 = vsel %vm331, %v325, 0
        %v339 = vsel %vm331, %v326, 0
        %341 = vmatprep.subr.bf16.mxu0 %v336
        %342 = vmatpush1.bf16.msra.mxu0 %v333
        %343 = vmatprep.subr.bf16.mxu0 0
        %344 = vmatpush1.bf16.msra.mxu0 0
        %345 = vmatprep.subr.bf16.mxu0 0
        %346 = vmatpush1.bf16.msra.mxu0 0
        %347 = vmatprep.subr.bf16.mxu0 0
        %348 = vmatpush1.bf16.msra.mxu0 0
        %349 = vmatprep.subr.bf16.mxu0 0
        %350 = vmatpush1.bf16.msra.mxu0 0
        %351 = vmatprep.subr.bf16.mxu0 0
        %352 = vmatpush1.bf16.msra.mxu0 0
        %353 = vmatprep.subr.bf16.mxu0 0
        %354 = vmatpush1.bf16.msra.mxu0 0
        %355 = vmatprep.subr.bf16.mxu0 0
        %356 = vmatpush1.bf16.msra.mxu0 0
        %357 = vmatprep.subr.bf16.mxu0 0
        %358 = vmatpush1.bf16.msra.mxu0 0
        %359 = vmatprep.subr.bf16.mxu0 0
        %360 = vmatpush1.bf16.msra.mxu0 0
        %361 = vmatprep.subr.bf16.mxu0 0
        %362 = vmatpush1.bf16.msra.mxu0 0
        %363 = vmatprep.subr.bf16.mxu0 0
        %364 = vmatpush1.bf16.msra.mxu0 0
        %365 = vmatprep.subr.bf16.mxu0 0
        %366 = vmatpush1.bf16.msra.mxu0 0
        %367 = vmatprep.subr.bf16.mxu0 0
        %368 = vmatpush1.bf16.msra.mxu0 0
        %369 = vmatprep.subr.bf16.mxu0 0
        %370 = vmatpush1.bf16.msra.mxu0 0
        %371 = vmatprep.subr.bf16.mxu0 0
        %372 = vmatpush1.bf16.msra.mxu0 0
        %373 = vmatprep.mubr.bf16.mxu0 0
        %374 = vmatmul.mubr.bf16.gmra.mrb[0].mxu0 %v329
        %v375 = vpop.f32.mrb[0].mxu0
        %v376 = vadd.f32 0.0, %v375
        %v377 = vpop.f32.mrb[0].mxu0
        %v378 = vadd.f32 0.0, %v377
        %v379 = vpop.f32.mrb[0].mxu0
        %v380 = vpop.f32.mrb[0].mxu0
        %381 = vdwg.mxu0
        %382 = vmatprep.subr.bf16.mxu0 0
        %383 = vmatpush1.bf16.msra.mxu0 %v339
        %384 = vmatprep.subr.bf16.mxu0 0
        %385 = vmatpush1.bf16.msra.mxu0 0
        %386 = vmatprep.subr.bf16.mxu0 0
        %387 = vmatpush1.bf16.msra.mxu0 0
        %388 = vmatprep.subr.bf16.mxu0 0
        %389 = vmatpush1.bf16.msra.mxu0 0
        %390 = vmatprep.subr.bf16.mxu0 0
        %391 = vmatpush1.bf16.msra.mxu0 0
        %392 = vmatprep.subr.bf16.mxu0 0
        %393 = vmatpush1.bf16.msra.mxu0 0
        %394 = vmatprep.subr.bf16.mxu0 0
        %395 = vmatpush1.bf16.msra.mxu0 0
        %396 = vmatprep.subr.bf16.mxu0 0
        %397 = vmatpush1.bf16.msra.mxu0 0
        %398 = vmatprep.subr.bf16.mxu0 0
        %399 = vmatpush1.bf16.msra.mxu0 0
        %400 = vmatprep.subr.bf16.mxu0 0
        %401 = vmatpush1.bf16.msra.mxu0 0
        %402 = vmatprep.subr.bf16.mxu0 0
        %403 = vmatpush1.bf16.msra.mxu0 0
        %404 = vmatprep.subr.bf16.mxu0 0
        %405 = vmatpush1.bf16.msra.mxu0 0
        %406 = vmatprep.subr.bf16.mxu0 0
        %407 = vmatpush1.bf16.msra.mxu0 0
        %408 = vmatprep.subr.bf16.mxu0 0
        %409 = vmatpush1.bf16.msra.mxu0 0
        %410 = vmatprep.subr.bf16.mxu0 0
        %411 = vmatpush1.bf16.msra.mxu0 0
        %412 = vmatprep.subr.bf16.mxu0 0
        %413 = vmatpush1.bf16.msra.mxu0 0
        %414 = vmatprep.mubr.bf16.mxu0 0
        %415 = vmatmul.mubr.bf16.gmra.mrb[0].mxu0 %v329
        %v416 = vpop.f32.mrb[0].mxu0
        %v417 = vadd.f32 0.0, %v416
        %v418 = vpop.f32.mrb[0].mxu0
        %v419 = vpop.f32.mrb[0].mxu0
        %v420 = vpop.f32.mrb[0].mxu0
        %421 = vdwg.mxu0
        %v423 = vsel %vm327, %v308, 0
        %v426 = vsel %vm331, %v304, 0
        %v429 = vsel %vm331, %v305, 0
        %v432 = vsel %vm331, %v306, 0
        %434 = vmatprep.subr.bf16.mxu0 %v429
        %435 = vmatpush1.bf16.msra.mxu0 %v426
        %436 = vmatprep.subr.bf16.mxu0 0
        %437 = vmatpush1.bf16.msra.mxu0 0
        %438 = vmatprep.subr.bf16.mxu0 0
        %439 = vmatpush1.bf16.msra.mxu0 0
        %440 = vmatprep.subr.bf16.mxu0 0
        %441 = vmatpush1.bf16.msra.mxu0 0
        %442 = vmatprep.subr.bf16.mxu0 0
        %443 = vmatpush1.bf16.msra.mxu0 0
        %444 = vmatprep.subr.bf16.mxu0 0
        %445 = vmatpush1.bf16.msra.mxu0 0
        %446 = vmatprep.subr.bf16.mxu0 0
        %447 = vmatpush1.bf16.msra.mxu0 0
        %448 = vmatprep.subr.bf16.mxu0 0
        %449 = vmatpush1.bf16.msra.mxu0 0
        %450 = vmatprep.subr.bf16.mxu0 0
        %451 = vmatpush1.bf16.msra.mxu0 0
        %452 = vmatprep.subr.bf16.mxu0 0
        %453 = vmatpush1.bf16.msra.mxu0 0
        %454 = vmatprep.subr.bf16.mxu0 0
        %455 = vmatpush1.bf16.msra.mxu0 0
        %456 = vmatprep.subr.bf16.mxu0 0
        %457 = vmatpush1.bf16.msra.mxu0 0
        %458 = vmatprep.subr.bf16.mxu0 0
        %459 = vmatpush1.bf16.msra.mxu0 0
        %460 = vmatprep.subr.bf16.mxu0 0
        %461 = vmatpush1.bf16.msra.mxu0 0
        %462 = vmatprep.subr.bf16.mxu0 0
        %463 = vmatpush1.bf16.msra.mxu0 0
        %464 = vmatprep.subr.bf16.mxu0 0
        %465 = vmatpush1.bf16.msra.mxu0 0
        %466 = vmatprep.mubr.bf16.mxu0 0
        %467 = vmatmul.mubr.bf16.gmra.mrb[0].mxu0 %v423
        %v468 = vpop.f32.mrb[0].mxu0
        %v469 = vadd.f32 %v376, %v468
        %v470 = vpop.f32.mrb[0].mxu0
        %v471 = vadd.f32 %v378, %v470
        %v472 = vpop.f32.mrb[0].mxu0
        %v473 = vpop.f32.mrb[0].mxu0
        %474 = vdwg.mxu0
        %475 = vmatprep.subr.bf16.mxu0 0
        %476 = vmatpush1.bf16.msra.mxu0 %v432
        %477 = vmatprep.subr.bf16.mxu0 0
        %478 = vmatpush1.bf16.msra.mxu0 0
        %479 = vmatprep.subr.bf16.mxu0 0
        %480 = vmatpush1.bf16.msra.mxu0 0
        %481 = vmatprep.subr.bf16.mxu0 0
        %482 = vmatpush1.bf16.msra.mxu0 0
        %483 = vmatprep.subr.bf16.mxu0 0
        %484 = vmatpush1.bf16.msra.mxu0 0
        %485 = vmatprep.subr.bf16.mxu0 0
        %486 = vmatpush1.bf16.msra.mxu0 0
        %487 = vmatprep.subr.bf16.mxu0 0
        %488 = vmatpush1.bf16.msra.mxu0 0
        %489 = vmatprep.subr.bf16.mxu0 0
        %490 = vmatpush1.bf16.msra.mxu0 0
        %491 = vmatprep.subr.bf16.mxu0 0
        %492 = vmatpush1.bf16.msra.mxu0 0
        %493 = vmatprep.subr.bf16.mxu0 0
        %494 = vmatpush1.bf16.msra.mxu0 0
        %495 = vmatprep.subr.bf16.mxu0 0
        %496 = vmatpush1.bf16.msra.mxu0 0
        %497 = vmatprep.subr.bf16.mxu0 0
        %498 = vmatpush1.bf16.msra.mxu0 0
        %499 = vmatprep.subr.bf16.mxu0 0
        %500 = vmatpush1.bf16.msra.mxu0 0
        %501 = vmatprep.subr.bf16.mxu0 0
        %502 = vmatpush1.bf16.msra.mxu0 0
        %503 = vmatprep.subr.bf16.mxu0 0
        %504 = vmatpush1.bf16.msra.mxu0 0
        %505 = vmatprep.subr.bf16.mxu0 0
        %506 = vmatpush1.bf16.msra.mxu0 0
        %507 = vmatprep.mubr.bf16.mxu0 0
        %508 = vmatmul.mubr.bf16.gmra.mrb[0].mxu0 %v423
        %v509 = vpop.f32.mrb[0].mxu0
        %v510 = vadd.f32 %v417, %v509
        %v511 = vpop.f32.mrb[0].mxu0
        %v512 = vpop.f32.mrb[0].mxu0
        %v513 = vpop.f32.mrb[0].mxu0
        %514 = vdwg.mxu0
        %s515 = scalar_lea.vmem %s0, 4
        %v516 = vld [vmem:[%s515] sm:$0x3]
        %517 = vrot.lane.b32.xlu0 %v304, 126
        %v518 = vpop.permute.xlu0 %517
        %519 = vrot.lane.b32.xlu0 %v305, 126
        %v520 = vpop.permute.xlu0 %519
        %521 = vrot.lane.b32.xlu0 %v306, 126
        %v522 = vpop.permute.xlu0 %521
        %523 = vrot.lane.b32.xlu0 %v307, 126
        %v524 = vpop.permute.xlu0 %523
        %vm525 = vcmask 1031168
        %v526 = vsel %vm525, %v518, %v520
        %v527 = vsel %vm525, %v520, %v522
        %v528 = vsel %vm525, %v522, %v524
        %v530 = vsel %vm327, %v516, 0
        %v533 = vsel %vm331, %v526, 0
        %v536 = vsel %vm331, %v527, 0
        %v539 = vsel %vm331, %v528, 0
        %541 = vmatprep.subr.bf16.mxu0 %v536
        %542 = vmatpush1.bf16.msra.mxu0 %v533
        %543 = vmatprep.subr.bf16.mxu0 0
        %544 = vmatpush1.bf16.msra.mxu0 0
        %545 = vmatprep.subr.bf16.mxu0 0
        %546 = vmatpush1.bf16.msra.mxu0 0
        %547 = vmatprep.subr.bf16.mxu0 0
        %548 = vmatpush1.bf16.msra.mxu0 0
        %549 = vmatprep.subr.bf16.mxu0 0
        %550 = vmatpush1.bf16.msra.mxu0 0
        %551 = vmatprep.subr.bf16.mxu0 0
        %552 = vmatpush1.bf16.msra.mxu0 0
        %553 = vmatprep.subr.bf16.mxu0 0
        %554 = vmatpush1.bf16.msra.mxu0 0
        %555 = vmatprep.subr.bf16.mxu0 0
        %556 = vmatpush1.bf16.msra.mxu0 0
        %557 = vmatprep.subr.bf16.mxu0 0
        %558 = vmatpush1.bf16.msra.mxu0 0
        %559 = vmatprep.subr.bf16.mxu0 0
        %560 = vmatpush1.bf16.msra.mxu0 0
        %561 = vmatprep.subr.bf16.mxu0 0
        %562 = vmatpush1.bf16.msra.mxu0 0
        %563 = vmatprep.subr.bf16.mxu0 0
        %564 = vmatpush1.bf16.msra.mxu0 0
        %565 = vmatprep.subr.bf16.mxu0 0
        %566 = vmatpush1.bf16.msra.mxu0 0
        %567 = vmatprep.subr.bf16.mxu0 0
        %568 = vmatpush1.bf16.msra.mxu0 0
        %569 = vmatprep.subr.bf16.mxu0 0
        %570 = vmatpush1.bf16.msra.mxu0 0
        %571 = vmatprep.subr.bf16.mxu0 0
        %572 = vmatpush1.bf16.msra.mxu0 0
        %573 = vmatprep.mubr.bf16.mxu0 0
        %574 = vmatmul.mubr.bf16.gmra.mrb[0].mxu0 %v530
        %v575 = vpop.f32.mrb[0].mxu0
        %v576 = vadd.f32 0.0, %v575
        %v577 = vpop.f32.mrb[0].mxu0
        %v578 = vadd.f32 0.0, %v577
        %v579 = vpop.f32.mrb[0].mxu0
        %v580 = vpop.f32.mrb[0].mxu0
        %581 = vdwg.mxu0
        %582 = vmatprep.subr.bf16.mxu0 0
        %583 = vmatpush1.bf16.msra.mxu0 %v539
        %584 = vmatprep.subr.bf16.mxu0 0
        %585 = vmatpush1.bf16.msra.mxu0 0
        %586 = vmatprep.subr.bf16.mxu0 0
        %587 = vmatpush1.bf16.msra.mxu0 0
        %588 = vmatprep.subr.bf16.mxu0 0
        %589 = vmatpush1.bf16.msra.mxu0 0
        %590 = vmatprep.subr.bf16.mxu0 0
        %591 = vmatpush1.bf16.msra.mxu0 0
        %592 = vmatprep.subr.bf16.mxu0 0
        %593 = vmatpush1.bf16.msra.mxu0 0
        %594 = vmatprep.subr.bf16.mxu0 0
        %595 = vmatpush1.bf16.msra.mxu0 0
        %596 = vmatprep.subr.bf16.mxu0 0
        %597 = vmatpush1.bf16.msra.mxu0 0
        %598 = vmatprep.subr.bf16.mxu0 0
        %599 = vmatpush1.bf16.msra.mxu0 0
        %600 = vmatprep.subr.bf16.mxu0 0
        %601 = vmatpush1.bf16.msra.mxu0 0
        %602 = vmatprep.subr.bf16.mxu0 0
        %603 = vmatpush1.bf16.msra.mxu0 0
        %604 = vmatprep.subr.bf16.mxu0 0
        %605 = vmatpush1.bf16.msra.mxu0 0
        %606 = vmatprep.subr.bf16.mxu0 0
        %607 = vmatpush1.bf16.msra.mxu0 0
        %608 = vmatprep.subr.bf16.mxu0 0
        %609 = vmatpush1.bf16.msra.mxu0 0
        %610 = vmatprep.subr.bf16.mxu0 0
        %611 = vmatpush1.bf16.msra.mxu0 0
        %612 = vmatprep.subr.bf16.mxu0 0
        %613 = vmatpush1.bf16.msra.mxu0 0
        %614 = vmatprep.mubr.bf16.mxu0 0
        %615 = vmatmul.mubr.bf16.gmra.mrb[0].mxu0 %v530
        %v616 = vpop.f32.mrb[0].mxu0
        %v617 = vadd.f32 0.0, %v616
        %v618 = vpop.f32.mrb[0].mxu0
        %v619 = vpop.f32.mrb[0].mxu0
        %v620 = vpop.f32.mrb[0].mxu0
        %621 = vdwg.mxu0
        %v622 = vadd.f32 %v469, %v576
        %v623 = vadd.f32 %v471, %v578
        %v624 = vadd.f32 %v510, %v617
        %s625 = scalar_lea.vmem %s0, 6
        %v626 = vld [vmem:[%s625] sm:$0x3]
        %627 = vrot.lane.b32.xlu0 %v304, 110
        %v628 = vpop.permute.xlu0 %627
        %629 = vrot.lane.b32.xlu0 %v305, 110
        %v630 = vpop.permute.xlu0 %629
        %631 = vrot.lane.b32.xlu0 %v306, 110
        %v632 = vpop.permute.xlu0 %631
        %633 = vrot.lane.b32.xlu0 %v307, 110
        %v634 = vpop.permute.xlu0 %633
        %vm635 = vcmask 900096
        %v636 = vsel %vm635, %v628, %v630
        %v637 = vsel %vm635, %v630, %v632
        %v638 = vsel %vm635, %v632, %v634
        %v640 = vsel %vm327, %v626, 0
        %v643 = vsel %vm331, %v636, 0
        %v646 = vsel %vm331, %v637, 0
        %v649 = vsel %vm331, %v638, 0
        %651 = vmatprep.subr.bf16.mxu0 %v646
        %652 = vmatpush1.bf16.msra.mxu0 %v643
        %653 = vmatprep.subr.bf16.mxu0 0
        %654 = vmatpush1.bf16.msra.mxu0 0
        %655 = vmatprep.subr.bf16.mxu0 0
        %656 = vmatpush1.bf16.msra.mxu0 0
        %657 = vmatprep.subr.bf16.mxu0 0
        %658 = vmatpush1.bf16.msra.mxu0 0
        %659 = vmatprep.subr.bf16.mxu0 0
        %660 = vmatpush1.bf16.msra.mxu0 0
        %661 = vmatprep.subr.bf16.mxu0 0
        %662 = vmatpush1.bf16.msra.mxu0 0
        %663 = vmatprep.subr.bf16.mxu0 0
        %664 = vmatpush1.bf16.msra.mxu0 0
        %665 = vmatprep.subr.bf16.mxu0 0
        %666 = vmatpush1.bf16.msra.mxu0 0
        %667 = vmatprep.subr.bf16.mxu0 0
        %668 = vmatpush1.bf16.msra.mxu0 0
        %669 = vmatprep.subr.bf16.mxu0 0
        %670 = vmatpush1.bf16.msra.mxu0 0
        %671 = vmatprep.subr.bf16.mxu0 0
        %672 = vmatpush1.bf16.msra.mxu0 0
        %673 = vmatprep.subr.bf16.mxu0 0
        %674 = vmatpush1.bf16.msra.mxu0 0
        %675 = vmatprep.subr.bf16.mxu0 0
        %676 = vmatpush1.bf16.msra.mxu0 0
        %677 = vmatprep.subr.bf16.mxu0 0
        %678 = vmatpush1.bf16.msra.mxu0 0
        %679 = vmatprep.subr.bf16.mxu0 0
        %680 = vmatpush1.bf16.msra.mxu0 0
        %681 = vmatprep.subr.bf16.mxu0 0
        %682 = vmatpush1.bf16.msra.mxu0 0
        %683 = vmatprep.mubr.bf16.mxu0 0
        %684 = vmatmul.mubr.bf16.gmra.mrb[0].mxu0 %v640
        %v685 = vpop.f32.mrb[0].mxu0
        %v686 = vadd.f32 0.0, %v685
        %v687 = vpop.f32.mrb[0].mxu0
        %v688 = vadd.f32 0.0, %v687
        %v689 = vpop.f32.mrb[0].mxu0
        %v690 = vpop.f32.mrb[0].mxu0
        %691 = vdwg.mxu0
        %692 = vmatprep.subr.bf16.mxu0 0
        %693 = vmatpush1.bf16.msra.mxu0 %v649
        %694 = vmatprep.subr.bf16.mxu0 0
        %695 = vmatpush1.bf16.msra.mxu0 0
        %696 = vmatprep.subr.bf16.mxu0 0
        %697 = vmatpush1.bf16.msra.mxu0 0
        %698 = vmatprep.subr.bf16.mxu0 0
        %699 = vmatpush1.bf16.msra.mxu0 0
        %700 = vmatprep.subr.bf16.mxu0 0
        %701 = vmatpush1.bf16.msra.mxu0 0
        %702 = vmatprep.subr.bf16.mxu0 0
        %703 = vmatpush1.bf16.msra.mxu0 0
        %704 = vmatprep.subr.bf16.mxu0 0
        %705 = vmatpush1.bf16.msra.mxu0 0
        %706 = vmatprep.subr.bf16.mxu0 0
        %707 = vmatpush1.bf16.msra.mxu0 0
        %708 = vmatprep.subr.bf16.mxu0 0
        %709 = vmatpush1.bf16.msra.mxu0 0
        %710 = vmatprep.subr.bf16.mxu0 0
        %711 = vmatpush1.bf16.msra.mxu0 0
        %712 = vmatprep.subr.bf16.mxu0 0
        %713 = vmatpush1.bf16.msra.mxu0 0
        %714 = vmatprep.subr.bf16.mxu0 0
        %715 = vmatpush1.bf16.msra.mxu0 0
        %716 = vmatprep.subr.bf16.mxu0 0
        %717 = vmatpush1.bf16.msra.mxu0 0
        %718 = vmatprep.subr.bf16.mxu0 0
        %719 = vmatpush1.bf16.msra.mxu0 0
        %720 = vmatprep.subr.bf16.mxu0 0
        %721 = vmatpush1.bf16.msra.mxu0 0
        %722 = vmatprep.subr.bf16.mxu0 0
        %723 = vmatpush1.bf16.msra.mxu0 0
        %724 = vmatprep.mubr.bf16.mxu0 0
        %725 = vmatmul.mubr.bf16.gmra.mrb[0].mxu0 %v640
        %v726 = vpop.f32.mrb[0].mxu0
        %v727 = vadd.f32 0.0, %v726
        %v728 = vpop.f32.mrb[0].mxu0
        %v729 = vpop.f32.mrb[0].mxu0
        %v730 = vpop.f32.mrb[0].mxu0
        %731 = vdwg.mxu0
        %v732 = vadd.f32 %v622, %v686
        %v733 = vadd.f32 %v623, %v688
        %v734 = vadd.f32 %v624, %v727
        %s735 = scalar_lea.vmem %s0, 8
        %v736 = vld [vmem:[%s735] sm:$0x3]
        %737 = vrot.lane.b32.xlu0 %v304, 109
        %v738 = vpop.permute.xlu0 %737
        %739 = vrot.lane.b32.xlu0 %v305, 109
        %v740 = vpop.permute.xlu0 %739
        %741 = vrot.lane.b32.xlu0 %v306, 109
        %v742 = vpop.permute.xlu0 %741
        %743 = vrot.lane.b32.xlu0 %v307, 109
        %v744 = vpop.permute.xlu0 %743
        %vm745 = vcmask 891904
        %v746 = vsel %vm745, %v738, %v740
        %v747 = vsel %vm745, %v740, %v742
        %v748 = vsel %vm745, %v742, %v744
        %v750 = vsel %vm327, %v736, 0
        %v753 = vsel %vm331, %v746, 0
        %v756 = vsel %vm331, %v747, 0
        %v759 = vsel %vm331, %v748, 0
        %761 = vmatprep.subr.bf16.mxu0 %v756
        %762 = vmatpush1.bf16.msra.mxu0 %v753
        %763 = vmatprep.subr.bf16.mxu0 0
        %764 = vmatpush1.bf16.msra.mxu0 0
        %765 = vmatprep.subr.bf16.mxu0 0
        %766 = vmatpush1.bf16.msra.mxu0 0
        %767 = vmatprep.subr.bf16.mxu0 0
        %768 = vmatpush1.bf16.msra.mxu0 0
        %769 = vmatprep.subr.bf16.mxu0 0
        %770 = vmatpush1.bf16.msra.mxu0 0
        %771 = vmatprep.subr.bf16.mxu0 0
        %772 = vmatpush1.bf16.msra.mxu0 0
        %773 = vmatprep.subr.bf16.mxu0 0
        %774 = vmatpush1.bf16.msra.mxu0 0
        %775 = vmatprep.subr.bf16.mxu0 0
        %776 = vmatpush1.bf16.msra.mxu0 0
        %777 = vmatprep.subr.bf16.mxu0 0
        %778 = vmatpush1.bf16.msra.mxu0 0
        %779 = vmatprep.subr.bf16.mxu0 0
        %780 = vmatpush1.bf16.msra.mxu0 0
        %781 = vmatprep.subr.bf16.mxu0 0
        %782 = vmatpush1.bf16.msra.mxu0 0
        %783 = vmatprep.subr.bf16.mxu0 0
        %784 = vmatpush1.bf16.msra.mxu0 0
        %785 = vmatprep.subr.bf16.mxu0 0
        %786 = vmatpush1.bf16.msra.mxu0 0
        %787 = vmatprep.subr.bf16.mxu0 0
        %788 = vmatpush1.bf16.msra.mxu0 0
        %789 = vmatprep.subr.bf16.mxu0 0
        %790 = vmatpush1.bf16.msra.mxu0 0
        %791 = vmatprep.subr.bf16.mxu0 0
        %792 = vmatpush1.bf16.msra.mxu0 0
        %793 = vmatprep.mubr.bf16.mxu0 0
        %794 = vmatmul.mubr.bf16.gmra.mrb[0].mxu0 %v750
        %v795 = vpop.f32.mrb[0].mxu0
        %v796 = vadd.f32 0.0, %v795
        %v797 = vpop.f32.mrb[0].mxu0
        %v798 = vadd.f32 0.0, %v797
        %v799 = vpop.f32.mrb[0].mxu0
        %v800 = vpop.f32.mrb[0].mxu0
        %801 = vdwg.mxu0
        %802 = vmatprep.subr.bf16.mxu0 0
        %803 = vmatpush1.bf16.msra.mxu0 %v759
        %804 = vmatprep.subr.bf16.mxu0 0
        %805 = vmatpush1.bf16.msra.mxu0 0
        %806 = vmatprep.subr.bf16.mxu0 0
        %807 = vmatpush1.bf16.msra.mxu0 0
        %808 = vmatprep.subr.bf16.mxu0 0
        %809 = vmatpush1.bf16.msra.mxu0 0
        %810 = vmatprep.subr.bf16.mxu0 0
        %811 = vmatpush1.bf16.msra.mxu0 0
        %812 = vmatprep.subr.bf16.mxu0 0
        %813 = vmatpush1.bf16.msra.mxu0 0
        %814 = vmatprep.subr.bf16.mxu0 0
        %815 = vmatpush1.bf16.msra.mxu0 0
        %816 = vmatprep.subr.bf16.mxu0 0
        %817 = vmatpush1.bf16.msra.mxu0 0
        %818 = vmatprep.subr.bf16.mxu0 0
        %819 = vmatpush1.bf16.msra.mxu0 0
        %820 = vmatprep.subr.bf16.mxu0 0
        %821 = vmatpush1.bf16.msra.mxu0 0
        %822 = vmatprep.subr.bf16.mxu0 0
        %823 = vmatpush1.bf16.msra.mxu0 0
        %824 = vmatprep.subr.bf16.mxu0 0
        %825 = vmatpush1.bf16.msra.mxu0 0
        %826 = vmatprep.subr.bf16.mxu0 0
        %827 = vmatpush1.bf16.msra.mxu0 0
        %828 = vmatprep.subr.bf16.mxu0 0
        %829 = vmatpush1.bf16.msra.mxu0 0
        %830 = vmatprep.subr.bf16.mxu0 0
        %831 = vmatpush1.bf16.msra.mxu0 0
        %832 = vmatprep.subr.bf16.mxu0 0
        %833 = vmatpush1.bf16.msra.mxu0 0
        %834 = vmatprep.mubr.bf16.mxu0 0
        %835 = vmatmul.mubr.bf16.gmra.mrb[0].mxu0 %v750
        %v836 = vpop.f32.mrb[0].mxu0
        %v837 = vadd.f32 0.0, %v836
        %v838 = vpop.f32.mrb[0].mxu0
        %v839 = vpop.f32.mrb[0].mxu0
        %v840 = vpop.f32.mrb[0].mxu0
        %841 = vdwg.mxu0
        %v842 = vadd.f32 %v732, %v796
        %v843 = vadd.f32 %v733, %v798
        %v844 = vadd.f32 %v734, %v837
        %s845 = scalar_lea.vmem %s0, 10
        %v846 = vld [vmem:[%s845] sm:$0x3]
        %847 = vrot.lane.b32.xlu0 %v304, 108
        %v848 = vpop.permute.xlu0 %847
        %849 = vrot.lane.b32.xlu0 %v305, 108
        %v850 = vpop.permute.xlu0 %849
        %851 = vrot.lane.b32.xlu0 %v306, 108
        %v852 = vpop.permute.xlu0 %851
        %853 = vrot.lane.b32.xlu0 %v307, 108
        %v854 = vpop.permute.xlu0 %853
        %vm855 = vcmask 883712
        %v856 = vsel %vm855, %v848, %v850
        %v857 = vsel %vm855, %v850, %v852
        %v858 = vsel %vm855, %v852, %v854
        %v860 = vsel %vm327, %v846, 0
        %v863 = vsel %vm331, %v856, 0
        %v866 = vsel %vm331, %v857, 0
        %v869 = vsel %vm331, %v858, 0
        %871 = vmatprep.subr.bf16.mxu0 %v866
        %872 = vmatpush1.bf16.msra.mxu0 %v863
        %873 = vmatprep.subr.bf16.mxu0 0
        %874 = vmatpush1.bf16.msra.mxu0 0
        %875 = vmatprep.subr.bf16.mxu0 0
        %876 = vmatpush1.bf16.msra.mxu0 0
        %877 = vmatprep.subr.bf16.mxu0 0
        %878 = vmatpush1.bf16.msra.mxu0 0
        %879 = vmatprep.subr.bf16.mxu0 0
        %880 = vmatpush1.bf16.msra.mxu0 0
        %881 = vmatprep.subr.bf16.mxu0 0
        %882 = vmatpush1.bf16.msra.mxu0 0
        %883 = vmatprep.subr.bf16.mxu0 0
        %884 = vmatpush1.bf16.msra.mxu0 0
        %885 = vmatprep.subr.bf16.mxu0 0
        %886 = vmatpush1.bf16.msra.mxu0 0
        %887 = vmatprep.subr.bf16.mxu0 0
        %888 = vmatpush1.bf16.msra.mxu0 0
        %889 = vmatprep.subr.bf16.mxu0 0
        %890 = vmatpush1.bf16.msra.mxu0 0
        %891 = vmatprep.subr.bf16.mxu0 0
        %892 = vmatpush1.bf16.msra.mxu0 0
        %893 = vmatprep.subr.bf16.mxu0 0
        %894 = vmatpush1.bf16.msra.mxu0 0
        %895 = vmatprep.subr.bf16.mxu0 0
        %896 = vmatpush1.bf16.msra.mxu0 0
        %897 = vmatprep.subr.bf16.mxu0 0
        %898 = vmatpush1.bf16.msra.mxu0 0
        %899 = vmatprep.subr.bf16.mxu0 0
        %900 = vmatpush1.bf16.msra.mxu0 0
        %901 = vmatprep.subr.bf16.mxu0 0
        %902 = vmatpush1.bf16.msra.mxu0 0
        %903 = vmatprep.mubr.bf16.mxu0 0
        %904 = vmatmul.mubr.bf16.gmra.mrb[0].mxu0 %v860
        %v905 = vpop.f32.mrb[0].mxu0
        %v906 = vadd.f32 0.0, %v905
        %v907 = vpop.f32.mrb[0].mxu0
        %v908 = vadd.f32 0.0, %v907
        %v909 = vpop.f32.mrb[0].mxu0
        %v910 = vpop.f32.mrb[0].mxu0
        %911 = vdwg.mxu0
        %912 = vmatprep.subr.bf16.mxu0 0
        %913 = vmatpush1.bf16.msra.mxu0 %v869
        %914 = vmatprep.subr.bf16.mxu0 0
        %915 = vmatpush1.bf16.msra.mxu0 0
        %916 = vmatprep.subr.bf16.mxu0 0
        %917 = vmatpush1.bf16.msra.mxu0 0
        %918 = vmatprep.subr.bf16.mxu0 0
        %919 = vmatpush1.bf16.msra.mxu0 0
        %920 = vmatprep.subr.bf16.mxu0 0
        %921 = vmatpush1.bf16.msra.mxu0 0
        %922 = vmatprep.subr.bf16.mxu0 0
        %923 = vmatpush1.bf16.msra.mxu0 0
        %924 = vmatprep.subr.bf16.mxu0 0
        %925 = vmatpush1.bf16.msra.mxu0 0
        %926 = vmatprep.subr.bf16.mxu0 0
        %927 = vmatpush1.bf16.msra.mxu0 0
        %928 = vmatprep.subr.bf16.mxu0 0
        %929 = vmatpush1.bf16.msra.mxu0 0
        %930 = vmatprep.subr.bf16.mxu0 0
        %931 = vmatpush1.bf16.msra.mxu0 0
        %932 = vmatprep.subr.bf16.mxu0 0
        %933 = vmatpush1.bf16.msra.mxu0 0
        %934 = vmatprep.subr.bf16.mxu0 0
        %935 = vmatpush1.bf16.msra.mxu0 0
        %936 = vmatprep.subr.bf16.mxu0 0
        %937 = vmatpush1.bf16.msra.mxu0 0
        %938 = vmatprep.subr.bf16.mxu0 0
        %939 = vmatpush1.bf16.msra.mxu0 0
        %940 = vmatprep.subr.bf16.mxu0 0
        %941 = vmatpush1.bf16.msra.mxu0 0
        %942 = vmatprep.subr.bf16.mxu0 0
        %943 = vmatpush1.bf16.msra.mxu0 0
        %944 = vmatprep.mubr.bf16.mxu0 0
        %945 = vmatmul.mubr.bf16.gmra.mrb[0].mxu0 %v860
        %v946 = vpop.f32.mrb[0].mxu0
        %v947 = vadd.f32 0.0, %v946
        %v948 = vpop.f32.mrb[0].mxu0
        %v949 = vpop.f32.mrb[0].mxu0
        %v950 = vpop.f32.mrb[0].mxu0
        %951 = vdwg.mxu0
        %v952 = vadd.f32 %v842, %v906
        %v953 = vadd.f32 %v843, %v908
        %v954 = vadd.f32 %v844, %v947
        %s955 = scalar_lea.vmem %s0, 12
        %v956 = vld [vmem:[%s955] sm:$0x3]
        %957 = vrot.lane.b32.xlu0 %v304, 92
        %v958 = vpop.permute.xlu0 %957
        %959 = vrot.lane.b32.xlu0 %v305, 92
        %v960 = vpop.permute.xlu0 %959
        %961 = vrot.lane.b32.xlu0 %v306, 92
        %v962 = vpop.permute.xlu0 %961
        %963 = vrot.lane.b32.xlu0 %v307, 92
        %v964 = vpop.permute.xlu0 %963
        %vm965 = vcmask 752640
        %v966 = vsel %vm965, %v958, %v960
        %v967 = vsel %vm965, %v960, %v962
        %v968 = vsel %vm965, %v962, %v964
        %v970 = vsel %vm327, %v956, 0
        %v973 = vsel %vm331, %v966, 0
        %v976 = vsel %vm331, %v967, 0
        %v979 = vsel %vm331, %v968, 0
        %981 = vmatprep.subr.bf16.mxu0 %v976
        %982 = vmatpush1.bf16.msra.mxu0 %v973
        %983 = vmatprep.subr.bf16.mxu0 0
        %984 = vmatpush1.bf16.msra.mxu0 0
        %985 = vmatprep.subr.bf16.mxu0 0
        %986 = vmatpush1.bf16.msra.mxu0 0
        %987 = vmatprep.subr.bf16.mxu0 0
        %988 = vmatpush1.bf16.msra.mxu0 0
        %989 = vmatprep.subr.bf16.mxu0 0
        %990 = vmatpush1.bf16.msra.mxu0 0
        %991 = vmatprep.subr.bf16.mxu0 0
        %992 = vmatpush1.bf16.msra.mxu0 0
        %993 = vmatprep.subr.bf16.mxu0 0
        %994 = vmatpush1.bf16.msra.mxu0 0
        %995 = vmatprep.subr.bf16.mxu0 0
        %996 = vmatpush1.bf16.msra.mxu0 0
        %997 = vmatprep.subr.bf16.mxu0 0
        %998 = vmatpush1.bf16.msra.mxu0 0
        %999 = vmatprep.subr.bf16.mxu0 0
        %1000 = vmatpush1.bf16.msra.mxu0 0
        %1001 = vmatprep.subr.bf16.mxu0 0
        %1002 = vmatpush1.bf16.msra.mxu0 0
        %1003 = vmatprep.subr.bf16.mxu0 0
        %1004 = vmatpush1.bf16.msra.mxu0 0
        %1005 = vmatprep.subr.bf16.mxu0 0
        %1006 = vmatpush1.bf16.msra.mxu0 0
        %1007 = vmatprep.subr.bf16.mxu0 0
        %1008 = vmatpush1.bf16.msra.mxu0 0
        %1009 = vmatprep.subr.bf16.mxu0 0
        %1010 = vmatpush1.bf16.msra.mxu0 0
        %1011 = vmatprep.subr.bf16.mxu0 0
        %1012 = vmatpush1.bf16.msra.mxu0 0
        %1013 = vmatprep.mubr.bf16.mxu0 0
        %1014 = vmatmul.mubr.bf16.gmra.mrb[0].mxu0 %v970
        %v1015 = vpop.f32.mrb[0].mxu0
        %v1016 = vadd.f32 0.0, %v1015
        %v1017 = vpop.f32.mrb[0].mxu0
        %v1018 = vadd.f32 0.0, %v1017
        %v1019 = vpop.f32.mrb[0].mxu0
        %v1020 = vpop.f32.mrb[0].mxu0
        %1021 = vdwg.mxu0
        %1022 = vmatprep.subr.bf16.mxu0 0
        %1023 = vmatpush1.bf16.msra.mxu0 %v979
        %1024 = vmatprep.subr.bf16.mxu0 0
        %1025 = vmatpush1.bf16.msra.mxu0 0
        %1026 = vmatprep.subr.bf16.mxu0 0
        %1027 = vmatpush1.bf16.msra.mxu0 0
        %1028 = vmatprep.subr.bf16.mxu0 0
        %1029 = vmatpush1.bf16.msra.mxu0 0
        %1030 = vmatprep.subr.bf16.mxu0 0
        %1031 = vmatpush1.bf16.msra.mxu0 0
        %1032 = vmatprep.subr.bf16.mxu0 0
        %1033 = vmatpush1.bf16.msra.mxu0 0
        %1034 = vmatprep.subr.bf16.mxu0 0
        %1035 = vmatpush1.bf16.msra.mxu0 0
        %1036 = vmatprep.subr.bf16.mxu0 0
        %1037 = vmatpush1.bf16.msra.mxu0 0
        %1038 = vmatprep.subr.bf16.mxu0 0
        %1039 = vmatpush1.bf16.msra.mxu0 0
        %1040 = vmatprep.subr.bf16.mxu0 0
        %1041 = vmatpush1.bf16.msra.mxu0 0
        %1042 = vmatprep.subr.bf16.mxu0 0
        %1043 = vmatpush1.bf16.msra.mxu0 0
        %1044 = vmatprep.subr.bf16.mxu0 0
        %1045 = vmatpush1.bf16.msra.mxu0 0
        %1046 = vmatprep.subr.bf16.mxu0 0
        %1047 = vmatpush1.bf16.msra.mxu0 0
        %1048 = vmatprep.subr.bf16.mxu0 0
        %1049 = vmatpush1.bf16.msra.mxu0 0
        %1050 = vmatprep.subr.bf16.mxu0 0
        %1051 = vmatpush1.bf16.msra.mxu0 0
        %1052 = vmatprep.subr.bf16.mxu0 0
        %1053 = vmatpush1.bf16.msra.mxu0 0
        %1054 = vmatprep.mubr.bf16.mxu0 0
        %1055 = vmatmul.mubr.bf16.gmra.mrb[0].mxu0 %v970
        %v1056 = vpop.f32.mrb[0].mxu0
        %v1057 = vadd.f32 0.0, %v1056
        %v1058 = vpop.f32.mrb[0].mxu0
        %v1059 = vpop.f32.mrb[0].mxu0
        %v1060 = vpop.f32.mrb[0].mxu0
        %1061 = vdwg.mxu0
        %v1062 = vadd.f32 %v952, %v1016
        %v1063 = vadd.f32 %v953, %v1018
        %v1064 = vadd.f32 %v954, %v1057
        %s1065 = scalar_lea.vmem %s0, 14
        %v1066 = vld [vmem:[%s1065] sm:$0x3]
        %1067 = vrot.lane.b32.xlu0 %v304, 91
        %v1068 = vpop.permute.xlu0 %1067
        %1069 = vrot.lane.b32.xlu0 %v305, 91
        %v1070 = vpop.permute.xlu0 %1069
        %1071 = vrot.lane.b32.xlu0 %v306, 91
        %v1072 = vpop.permute.xlu0 %1071
        %1073 = vrot.lane.b32.xlu0 %v307, 91
        %v1074 = vpop.permute.xlu0 %1073
        %vm1075 = vcmask 744448
        %v1076 = vsel %vm1075, %v1068, %v1070
        %v1077 = vsel %vm1075, %v1070, %v1072
        %v1078 = vsel %vm1075, %v1072, %v1074
        %v1080 = vsel %vm327, %v1066, 0
        %v1083 = vsel %vm331, %v1076, 0
        %v1086 = vsel %vm331, %v1077, 0
        %v1089 = vsel %vm331, %v1078, 0
        %1091 = vmatprep.subr.bf16.mxu0 %v1086
        %1092 = vmatpush1.bf16.msra.mxu0 %v1083
        %1093 = vmatprep.subr.bf16.mxu0 0
        %1094 = vmatpush1.bf16.msra.mxu0 0
        %1095 = vmatprep.subr.bf16.mxu0 0
        %1096 = vmatpush1.bf16.msra.mxu0 0
        %1097 = vmatprep.subr.bf16.mxu0 0
        %1098 = vmatpush1.bf16.msra.mxu0 0
        %1099 = vmatprep.subr.bf16.mxu0 0
        %1100 = vmatpush1.bf16.msra.mxu0 0
        %1101 = vmatprep.subr.bf16.mxu0 0
        %1102 = vmatpush1.bf16.msra.mxu0 0
        %1103 = vmatprep.subr.bf16.mxu0 0
        %1104 = vmatpush1.bf16.msra.mxu0 0
        %1105 = vmatprep.subr.bf16.mxu0 0
        %1106 = vmatpush1.bf16.msra.mxu0 0
        %1107 = vmatprep.subr.bf16.mxu0 0
        %1108 = vmatpush1.bf16.msra.mxu0 0
        %1109 = vmatprep.subr.bf16.mxu0 0
        %1110 = vmatpush1.bf16.msra.mxu0 0
        %1111 = vmatprep.subr.bf16.mxu0 0
        %1112 = vmatpush1.bf16.msra.mxu0 0
        %1113 = vmatprep.subr.bf16.mxu0 0
        %1114 = vmatpush1.bf16.msra.mxu0 0
        %1115 = vmatprep.subr.bf16.mxu0 0
        %1116 = vmatpush1.bf16.msra.mxu0 0
        %1117 = vmatprep.subr.bf16.mxu0 0
        %1118 = vmatpush1.bf16.msra.mxu0 0
        %1119 = vmatprep.subr.bf16.mxu0 0
        %1120 = vmatpush1.bf16.msra.mxu0 0
        %1121 = vmatprep.subr.bf16.mxu0 0
        %1122 = vmatpush1.bf16.msra.mxu0 0
        %1123 = vmatprep.mubr.bf16.mxu0 0
        %1124 = vmatmul.mubr.bf16.gmra.mrb[0].mxu0 %v1080
        %v1125 = vpop.f32.mrb[0].mxu0
        %v1126 = vadd.f32 0.0, %v1125
        %v1127 = vpop.f32.mrb[0].mxu0
        %v1128 = vadd.f32 0.0, %v1127
        %v1129 = vpop.f32.mrb[0].mxu0
        %v1130 = vpop.f32.mrb[0].mxu0
        %1131 = vdwg.mxu0
        %1132 = vmatprep.subr.bf16.mxu0 0
        %1133 = vmatpush1.bf16.msra.mxu0 %v1089
        %1134 = vmatprep.subr.bf16.mxu0 0
        %1135 = vmatpush1.bf16.msra.mxu0 0
        %1136 = vmatprep.subr.bf16.mxu0 0
        %1137 = vmatpush1.bf16.msra.mxu0 0
        %1138 = vmatprep.subr.bf16.mxu0 0
        %1139 = vmatpush1.bf16.msra.mxu0 0
        %1140 = vmatprep.subr.bf16.mxu0 0
        %1141 = vmatpush1.bf16.msra.mxu0 0
        %1142 = vmatprep.subr.bf16.mxu0 0
        %1143 = vmatpush1.bf16.msra.mxu0 0
        %1144 = vmatprep.subr.bf16.mxu0 0
        %1145 = vmatpush1.bf16.msra.mxu0 0
        %1146 = vmatprep.subr.bf16.mxu0 0
        %1147 = vmatpush1.bf16.msra.mxu0 0
        %1148 = vmatprep.subr.bf16.mxu0 0
        %1149 = vmatpush1.bf16.msra.mxu0 0
        %1150 = vmatprep.subr.bf16.mxu0 0
        %1151 = vmatpush1.bf16.msra.mxu0 0
        %1152 = vmatprep.subr.bf16.mxu0 0
        %1153 = vmatpush1.bf16.msra.mxu0 0
        %1154 = vmatprep.subr.bf16.mxu0 0
        %1155 = vmatpush1.bf16.msra.mxu0 0
        %1156 = vmatprep.subr.bf16.mxu0 0
        %1157 = vmatpush1.bf16.msra.mxu0 0
        %1158 = vmatprep.subr.bf16.mxu0 0
        %1159 = vmatpush1.bf16.msra.mxu0 0
        %1160 = vmatprep.subr.bf16.mxu0 0
        %1161 = vmatpush1.bf16.msra.mxu0 0
        %1162 = vmatprep.subr.bf16.mxu0 0
        %1163 = vmatpush1.bf16.msra.mxu0 0
        %1164 = vmatprep.mubr.bf16.mxu0 0
        %1165 = vmatmul.mubr.bf16.gmra.mrb[0].mxu0 %v1080
        %v1166 = vpop.f32.mrb[0].mxu0
        %v1167 = vadd.f32 0.0, %v1166
        %v1168 = vpop.f32.mrb[0].mxu0
        %v1169 = vpop.f32.mrb[0].mxu0
        %v1170 = vpop.f32.mrb[0].mxu0
        %1171 = vdwg.mxu0
        %v1172 = vadd.f32 %v1062, %v1126
        %v1173 = vadd.f32 %v1063, %v1128
        %v1174 = vadd.f32 %v1064, %v1167
        %s1175 = scalar_lea.vmem %s0, 16
        %v1176 = vld [vmem:[%s1175] sm:$0x3]
        %1177 = vrot.lane.b32.xlu0 %v304, 90
        %v1178 = vpop.permute.xlu0 %1177
        %1179 = vrot.lane.b32.xlu0 %v305, 90
        %v1180 = vpop.permute.xlu0 %1179
        %1181 = vrot.lane.b32.xlu0 %v306, 90
        %v1182 = vpop.permute.xlu0 %1181
        %1183 = vrot.lane.b32.xlu0 %v307, 90
        %v1184 = vpop.permute.xlu0 %1183
        %vm1185 = vcmask 736256
        %v1186 = vsel %vm1185, %v1178, %v1180
        %v1187 = vsel %vm1185, %v1180, %v1182
        %v1188 = vsel %vm1185, %v1182, %v1184
        %v1190 = vsel %vm327, %v1176, 0
        %v1193 = vsel %vm331, %v1186, 0
        %v1196 = vsel %vm331, %v1187, 0
        %v1199 = vsel %vm331, %v1188, 0
        %1201 = vmatprep.subr.bf16.mxu0 %v1196
        %1202 = vmatpush1.bf16.msra.mxu0 %v1193
        %1203 = vmatprep.subr.bf16.mxu0 0
        %1204 = vmatpush1.bf16.msra.mxu0 0
        %1205 = vmatprep.subr.bf16.mxu0 0
        %1206 = vmatpush1.bf16.msra.mxu0 0
        %1207 = vmatprep.subr.bf16.mxu0 0
        %1208 = vmatpush1.bf16.msra.mxu0 0
        %1209 = vmatprep.subr.bf16.mxu0 0
        %1210 = vmatpush1.bf16.msra.mxu0 0
        %1211 = vmatprep.subr.bf16.mxu0 0
        %1212 = vmatpush1.bf16.msra.mxu0 0
        %1213 = vmatprep.subr.bf16.mxu0 0
        %1214 = vmatpush1.bf16.msra.mxu0 0
        %1215 = vmatprep.subr.bf16.mxu0 0
        %1216 = vmatpush1.bf16.msra.mxu0 0
        %1217 = vmatprep.subr.bf16.mxu0 0
        %1218 = vmatpush1.bf16.msra.mxu0 0
        %1219 = vmatprep.subr.bf16.mxu0 0
        %1220 = vmatpush1.bf16.msra.mxu0 0
        %1221 = vmatprep.subr.bf16.mxu0 0
        %1222 = vmatpush1.bf16.msra.mxu0 0
        %1223 = vmatprep.subr.bf16.mxu0 0
        %1224 = vmatpush1.bf16.msra.mxu0 0
        %1225 = vmatprep.subr.bf16.mxu0 0
        %1226 = vmatpush1.bf16.msra.mxu0 0
        %1227 = vmatprep.subr.bf16.mxu0 0
        %1228 = vmatpush1.bf16.msra.mxu0 0
        %1229 = vmatprep.subr.bf16.mxu0 0
        %1230 = vmatpush1.bf16.msra.mxu0 0
        %1231 = vmatprep.subr.bf16.mxu0 0
        %1232 = vmatpush1.bf16.msra.mxu0 0
        %1233 = vmatprep.mubr.bf16.mxu0 0
        %1234 = vmatmul.mubr.bf16.gmra.mrb[0].mxu0 %v1190
        %v1235 = vpop.f32.mrb[0].mxu0
        %v1236 = vadd.f32 0.0, %v1235
        %v1237 = vpop.f32.mrb[0].mxu0
        %v1238 = vadd.f32 0.0, %v1237
        %v1239 = vpop.f32.mrb[0].mxu0
        %v1240 = vpop.f32.mrb[0].mxu0
        %1241 = vdwg.mxu0
        %1242 = vmatprep.subr.bf16.mxu0 0
        %1243 = vmatpush1.bf16.msra.mxu0 %v1199
        %1244 = vmatprep.subr.bf16.mxu0 0
        %1245 = vmatpush1.bf16.msra.mxu0 0
        %1246 = vmatprep.subr.bf16.mxu0 0
        %1247 = vmatpush1.bf16.msra.mxu0 0
        %1248 = vmatprep.subr.bf16.mxu0 0
        %1249 = vmatpush1.bf16.msra.mxu0 0
        %1250 = vmatprep.subr.bf16.mxu0 0
        %1251 = vmatpush1.bf16.msra.mxu0 0
        %1252 = vmatprep.subr.bf16.mxu0 0
        %1253 = vmatpush1.bf16.msra.mxu0 0
        %1254 = vmatprep.subr.bf16.mxu0 0
        %1255 = vmatpush1.bf16.msra.mxu0 0
        %1256 = vmatprep.subr.bf16.mxu0 0
        %1257 = vmatpush1.bf16.msra.mxu0 0
        %1258 = vmatprep.subr.bf16.mxu0 0
        %1259 = vmatpush1.bf16.msra.mxu0 0
        %1260 = vmatprep.subr.bf16.mxu0 0
        %1261 = vmatpush1.bf16.msra.mxu0 0
        %1262 = vmatprep.subr.bf16.mxu0 0
        %1263 = vmatpush1.bf16.msra.mxu0 0
        %1264 = vmatprep.subr.bf16.mxu0 0
        %1265 = vmatpush1.bf16.msra.mxu0 0
        %1266 = vmatprep.subr.bf16.mxu0 0
        %1267 = vmatpush1.bf16.msra.mxu0 0
        %1268 = vmatprep.subr.bf16.mxu0 0
        %1269 = vmatpush1.bf16.msra.mxu0 0
        %1270 = vmatprep.subr.bf16.mxu0 0
        %1271 = vmatpush1.bf16.msra.mxu0 0
        %1272 = vmatprep.subr.bf16.mxu0 0
        %1273 = vmatpush1.bf16.msra.mxu0 0
        %1274 = vmatprep.mubr.bf16.mxu0 0
        %1275 = vmatmul.mubr.bf16.gmra.mrb[0].mxu0 %v1190
        %v1276 = vpop.f32.mrb[0].mxu0
        %v1277 = vadd.f32 0.0, %v1276
        %v1278 = vpop.f32.mrb[0].mxu0
        %v1279 = vpop.f32.mrb[0].mxu0
        %v1280 = vpop.f32.mrb[0].mxu0
        %1281 = vdwg.mxu0
        %v1282 = vadd.f32 %v1172, %v1236
        %v1283 = vadd.f32 %v1173, %v1238
        %v1284 = vadd.f32 %v1174, %v1277
        %v1285 = vld [vmem:[%s1] sm:$0xf]
        %1287 = vset.pattern.permute.xlu0 0
        %1288 = vperm.xlu0 %1287, %v1285
        %v1289 = vpop.permute.xlu0 %1288
        %v1291 = vadd.f32 %v1282, %v1289
        %v1292 = vadd.f32 %v1283, %v1289
        %v1293 = vadd.f32 %v1284, %v1289
        %v1294 = vmul.f32 %v1291, 0.2
        %v1295 = vmul.f32 %v1292, 0.2
        %v1296 = vmul.f32 %v1293, 0.2
        %v1297 = vmax.f32 %v1291, %v1294
        %v1298 = vmax.f32 %v1292, %v1295
        %v1299 = vmax.f32 %v1293, %v1296
        %1301 = vrot.lane.b32.xlu0 %v297, 109
        %v1302 = vpop.permute.xlu0 %1301
        %1303 = vrot.lane.b32.xlu0 %v302, 109
        %v1304 = vpop.permute.xlu0 %1303
        %1305 = vrot.lane.b32.xlu0 %v298, 109
        %v1306 = vpop.permute.xlu0 %1305
        %1307 = vrot.lane.b32.xlu0 %v299, 109
        %v1308 = vpop.permute.xlu0 %1307
        %vm1309 = vcmask 891904
        %v1310 = vsel %vm1309, %v1302, %v1304
        %v1311 = vsel %vm1309, %v1304, %v1306
        %v1312 = vsel %vm1309, %v1306, %v1308
        %v1316 = vadd.f32 %v1297, %v1310
        %v1317 = vadd.f32 %v1298, %v1311
        %v1318 = vadd.f32 %v1299, %v1312
        %v1321 = vcombine.low %v1316, %v1317
        %1323 = vst [vmem:[%s274] sm:$0xff] %v1321
        %1324 = vst [vmem:[%s274 + $0x8] sm:$0xf] %v1318
        %s1325 = sand.u32 %s145, 1
        %s1326 = scalar_lea.sflag [#allocation4], %s1325
        %s1327 = sand.u32 %s145, 1
        %s1328 = smul.addr %s1327, 12
        %s1329 = scalar_lea.vmem [#allocation5], %s1328
        // Predicated region
        $region41: #{tpu_custom_call.1} parent=35 // pred_check
          %p1330 = pneg %p155
        $region42: #{tpu_custom_call.1} parent=35 // pred_check_branch
          %1332 = sbr.rel (%p1330) target = $region44
        $region43: #{tpu_custom_call.1} parent=35 // pred_region
          %s1333 = smul.u32 3, %s26
          %s1335 = ssub.s32 192, 192
          %1336 = vsyncadd %s1326, %s1335
          %s1337 = smul.addr %s25, 3
          %s1338 = sadd.s32 %s1333, %s1337
          %s1339 = smul.addr %s1338, 64
          %s1340 = scalar_lea.hbm %s4, %s1339
          %s1342 = sshll.u32 %s1329, 4
          %s1343 = int_to_ptr.vmem [resolvable:$true] %s1342
          %1345 = dma.vmem_to_hbm [thread:$0]  %s1343, 192, %s1340, %s1326
        $region44: #{tpu_custom_call.1} parent=35 // pred_fallthru
          _
      $region36: #{tpu_custom_call.1} parent=5 // pred_fallthru
        _
      %p1346 = scmp.le.s32.totalorder 2, %s16
      // Predicated region
      $region45: #{tpu_custom_call.1} parent=5 // pred_check
        %p1347 = pneg %p1346
      $region46: #{tpu_custom_call.1} parent=5 // pred_check_branch
        %1349 = sbr.rel (%p1347) target = $region48
      $region47: #{tpu_custom_call.1} parent=5 // pred_region
        %s1350 = ssub.s32 %s16, 2
        // Predicated region
        $region49: #{tpu_custom_call.1} parent=47 // pred_check
          %p1351 = pneg %p161
        $region50: #{tpu_custom_call.1} parent=47 // pred_check_branch
          %1353 = sbr.rel (%p1351) target = $region52
        $region51: #{tpu_custom_call.1} parent=47 // pred_region
          %s1354 = sand.u32 %s146, 1
          %s1355 = scalar_lea.sflag [#allocation4], %s1354
          %s1356 = sand.u32 %s146, 1
          %s1357 = smul.addr %s1356, 12
          %s1358 = scalar_lea.vmem [#allocation5], %s1357
          %1359 = dma.done %s1355, 192
        $region52: #{tpu_custom_call.1} parent=47 // pred_fallthru
          _
      $region48: #{tpu_custom_call.1} parent=5 // pred_fallthru
        _
    $region6: #{tpu_custom_call.1} parent=1 // loop_footer
      %s20 = sadd.s32 1, %s16
    $region7: #{tpu_custom_call.1} parent=1 // loop_footer_branch
      %15 = sbr.rel target = $region3
    $region8: #{tpu_custom_call.1} parent=1 // loop_exit
      _
    %1360 = vsyncpa [#allocation3], 1
    %s1361 = scalar_lea.sflag [#allocation3], 1
    %1362 = vsyncpa %s1361, 1
    %1363 = vsyncpa [#allocation4], 1
    %s1364 = scalar_lea.sflag [#allocation4], 1
    %1365 = vsyncpa %s1364, 1

</llo_original>
